<compile_context>
chip_gen: v5e
topology: v5e:2x2
jax: 0.10.0
libtpu: 0.0.40
codegen_flags: <defaults>
</compile_context>

<pallas_src>
import functools

import jax
import jax.numpy as jnp
from jax.experimental import pallas as pl
from jax.experimental.pallas import tpu as pltpu


def _round_up(x, m):
    return (x + m - 1) // m * m


def _cdiv(a, b):
    return -(-a // b)


def _pad2d(x, rows, cols):
    r, c = x.shape
    if r == rows and c == cols:
        return x
    return jnp.pad(x, ((0, rows - r), (0, cols - c)))


def _physical_vmem_bytes():
    """Physical VMEM of the current chip; conservative fallback (v7x) if unknown."""
    try:
        return int(pltpu.get_tpu_info().vmem_capacity_bytes)
    except Exception:
        return 64 << 20


# --------------------------------------------------------------------------
# Kernel 1: hidden-dim-tiled matmul chain, split across cores on axis 0.
#   step (p, j):  h = relu(x @ w1[:, tile] + b1[tile])
#                 acc += h @ w2[tile, :]
#   last j of each p: write the core's partial f32 [2B, H] slab.
# --------------------------------------------------------------------------
def _siamese_matmul_kernel(x_ref, w1_ref, b1_ref, w2_ref, part_ref, acc_ref):
    j = pl.program_id(1)

    @pl.when(j == 0)
    def _init():
        acc_ref[...] = jnp.zeros_like(acc_ref)

    h = jnp.dot(x_ref[...], w1_ref[...], preferred_element_type=jnp.float32)
    h = jnp.maximum(h + b1_ref[...], 0.0)
    acc_ref[...] += jnp.dot(h.astype(w2_ref.dtype), w2_ref[...],
                            preferred_element_type=jnp.float32)

    @pl.when(j == pl.num_programs(1) - 1)
    def _store():
        part_ref[0] = acc_ref[...]


# --------------------------------------------------------------------------
# Kernel 2: tiny epilogue — combine per-core partials, add b2, ReLU, take the
# pairwise difference and the row-wise L2 norm.
# --------------------------------------------------------------------------
def _siamese_epilogue_kernel(part_ref, b2_ref, out_ref, *, b_pad, n_par):
    acc = part_ref[0]
    for i in range(1, n_par):
        acc = acc + part_ref[i]
    e = jnp.maximum(acc + b2_ref[...], 0.0)          # [2*b_pad, h_out]
    d = e[:b_pad, :] - e[b_pad:, :]                  # encoder(x1) - encoder(x2)
    # Last-dim-1 output -> masked store; negligible at B<=8.  For large batch,
    # switch to a lane-dense [1, b_pad] layout instead.
    out_ref[...] = jnp.sqrt(jnp.sum(d * d, axis=1, keepdims=True))


# --------------------------------------------------------------------------
# One-time weight preparation (hoisted out of the hot path).
# --------------------------------------------------------------------------
def prepare_siamese_params(w1, b1, w2, b2, *, th_max=None, n_par=2):
    """Pad + cast the weights once.  Returns (device params, static config)."""
    w1 = jnp.asarray(w1)
    w2 = jnp.asarray(w2)
    F, H = w1.shape
    assert w2.shape == (H, H)
    b1 = jnp.asarray(b1).reshape(1, -1)
    b2 = jnp.asarray(b2).reshape(1, -1)

    phys_vmem = _physical_vmem_bytes()
    if th_max is None:
        # v5e/v6e (128 MiB VMEM): bigger tiles amortize step overhead further.
        th_max = 2048 if phys_vmem >= (100 << 20) else 1024

    n_par = max(1, int(n_par))
    if _round_up(H, 256) <= 256:
        n_par = 1  # not enough hidden tiles to split

    # Pick tile size: multiple of 256, <= th_max, minimal zero padding of the
    # tiled (contraction) hidden axis given n_par cores x spp steps each.
    spp = max(1, _cdiv(H, n_par * th_max))           # steps per core
    th = _round_up(_cdiv(H, n_par * spp), 256)       # hidden tile width
    h_k = n_par * spp * th                           # padded tiled hidden dim
    h_out = _round_up(H, 256)                        # padded output hidden dim
    f_pad = _round_up(F, 128)

    w1p = _pad2d(w1, f_pad, h_k).astype(jnp.bfloat16)
    b1p = _pad2d(b1, 1, h_k).astype(jnp.float32)
    w2p = _pad2d(w2, h_k, h_out).astype(jnp.bfloat16)
    b2p = _pad2d(b2, 1, h_out).astype(jnp.float32)

    params = (w1p, b1p, w2p, b2p)
    cfg = dict(F=F, H=H, f_pad=f_pad, h_k=h_k, h_out=h_out, th=th,
               n_par=n_par, spp=spp, phys_vmem=phys_vmem)
    return params, cfg


# --------------------------------------------------------------------------
# Forward pass (jit this; weights are already padded/cast).
# --------------------------------------------------------------------------
def siamese_forward(x1, x2, params, cfg):
    w1p, b1p, w2p, b2p = params
    B, F = x1.shape
    assert F == cfg["F"] and x2.shape == x1.shape

    f_pad, h_k, h_out = cfg["f_pad"], cfg["h_k"], cfg["h_out"]
    th, n_par, spp = cfg["th"], cfg["n_par"], cfg["spp"]
    b_pad = _round_up(B, 8)

    # Stack x1/x2 into one LHS so each weight tile is streamed exactly once.
    x = jnp.concatenate(
        [_pad2d(x1, b_pad, f_pad), _pad2d(x2, b_pad, f_pad)], axis=0
    ).astype(jnp.bfloat16)                                    # [2*b_pad, f_pad]

    # VMEM needed by this kernel's blocks (double-buffered inputs/output block
    # + resident f32 accumulator), with headroom; hard-capped below physical.
    need = (
        2 * (2 * b_pad) * f_pad * 2        # x (bf16, 2 buffers)
        + 2 * f_pad * th * 2               # w1 column tile
        + 2 * th * 4                       # b1 tile
        + 2 * th * h_out * 2               # w2 row tile
        + (2 * b_pad) * h_out * 4          # f32 accumulator scratch
        + 2 * (2 * b_pad) * h_out * 4      # partial-output block
    )
    need = int(need * 1.25) + (2 << 20)
    cap = (cfg["phys_vmem"] * 3) // 4      # never exceed physical (v7x: 64 MiB)
    vmem_limit = int(min(max(need, 24 << 20), cap))

    partials = pl.pallas_call(
        _siamese_matmul_kernel,
        out_shape=jax.ShapeDtypeStruct((n_par, 2 * b_pad, h_out), jnp.float32),
        grid=(n_par, spp),
        in_specs=[
            pl.BlockSpec((2 * b_pad, f_pad), lambda p, j: (0, 0)),      # x (resident)
            pl.BlockSpec((f_pad, th), lambda p, j: (0, p * spp + j)),   # w1 col tile
            pl.BlockSpec((1, th), lambda p, j: (0, p * spp + j)),       # b1 tile
            pl.BlockSpec((th, h_out), lambda p, j: (p * spp + j, 0)),   # w2 row tile
        ],
        out_specs=pl.BlockSpec((1, 2 * b_pad, h_out), lambda p, j: (p, 0, 0)),
        scratch_shapes=[pltpu.VMEM((2 * b_pad, h_out), jnp.float32)],
        compiler_params=pltpu.CompilerParams(
            dimension_semantics=("parallel", "arbitrary"),  # split cores / reduce
            vmem_limit_bytes=vmem_limit,
        ),
    )(x, w1p, b1p, w2p)

    out = pl.pallas_call(
        functools.partial(_siamese_epilogue_kernel, b_pad=b_pad, n_par=n_par),
        out_shape=jax.ShapeDtypeStruct((b_pad, 1), jnp.float32),
    )(partials, b2p)

    return out[:B, 0]


# --------------------------------------------------------------------------
# References.
# --------------------------------------------------------------------------
def siamese_reference_f32(x1, x2, w1, b1, w2, b2):
    b1 = jnp.asarray(b1).reshape(1, -1)
    b2 = jnp.asarray(b2).reshape(1, -1)

    def enc(x):
        h = jnp.maximum(x @ w1 + b1, 0.0)
        return jnp.maximum(h @ w2 + b2, 0.0)

    d = enc(x1) - enc(x2)
    return jnp.sqrt(jnp.sum(d * d, axis=1))


def siamese_reference_bf16(x1, x2, w1, b1, w2, b2):
    """Emulates the kernel's precision path: bf16 operands, f32 accumulation."""
    bf = jnp.bfloat16
    b1 = jnp.asarray(b1).reshape(1, -1).astype(jnp.float32)
    b2 = jnp.asarray(b2).reshape(1, -1).astype(jnp.float32)

    def enc(x):
        h = jnp.dot(x.astype(bf), w1.astype(bf),
                    preferred_element_type=jnp.float32)
        h = jnp.maximum(h + b1, 0.0)
        e = jnp.dot(h.astype(bf), w2.astype(bf),
                    preferred_element_type=jnp.float32)
        return jnp.maximum(e + b2, 0.0)

    d = enc(x1) - enc(x2)
    return jnp.sqrt(jnp.sum(d * d, axis=1))


if __name__ == "__main__":
    # Small, TPU-tile-friendly stand-ins for (input_size=2500, hidden_size=4500).
    B = 8          # batch
    F = 256        # input_size
    H = 1024       # hidden_size

    key = jax.random.PRNGKey(0)
    k1, k2, k3, k4, k5, k6 = jax.random.split(key, 6)

    x1 = jax.random.normal(k1, (B, F), dtype=jnp.float32)
    x2 = jax.random.normal(k2, (B, F), dtype=jnp.float32)

    # Deterministic synthetic parameters (Kaiming-ish scale).
    w1 = jax.random.normal(k3, (F, H), dtype=jnp.float32) * (1.0 / jnp.sqrt(F))
    b1 = jax.random.normal(k4, (1, H), dtype=jnp.float32) * 0.01
    w2 = jax.random.normal(k5, (H, H), dtype=jnp.float32) * (1.0 / jnp.sqrt(H))
    b2 = jax.random.normal(k6, (1, H), dtype=jnp.float32) * 0.01

    # th_max=256 at H=1024 -> grid=(2 cores, 2 steps/core): exercises both the
    # cross-core split and the in-core accumulate/finalize path.
    params, cfg = prepare_siamese_params(w1, b1, w2, b2, th_max=256, n_par=2)
    fwd = jax.jit(functools.partial(siamese_forward, cfg=cfg))

    out = jax.block_until_ready(fwd(x1, x2, params))
    assert out.shape == (B,)

    # Tight check against a reference that matches the kernel's precision path.
    ref_bf16 = siamese_reference_bf16(x1, x2, w1, b1, w2, b2)
    assert jnp.allclose(out, ref_bf16, rtol=1e-3, atol=1e-3), (out, ref_bf16)

    # Loose check against the pure-f32 reference (bf16 weights/activations).
    ref_f32 = siamese_reference_f32(x1, x2, w1, b1, w2, b2)
    assert jnp.allclose(out, ref_f32, rtol=2e-2, atol=2e-2), (out, ref_f32)

    print("KERNEL_OK")
</pallas_src>

<mosaic_0001>
module attributes {stable_mosaic.version = 11 : i64} {
  func.func @_siamese_epilogue_kernel(%arg0: memref<2x16x1024xf32, #tpu.memory_space<vmem>>, %arg1: memref<1x1024xf32, #tpu.memory_space<vmem>>, %arg2: memref<8x1xf32, #tpu.memory_space<vmem>>) attributes {dimension_semantics = [], scalar_prefetch = 0 : i64, scratch_operands = 0 : i64, tpu.core_type = #tpu.core_type<tc>} {
    %c0 = arith.constant 0 : index
    %c0_0 = arith.constant 0 : index
    %c0_1 = arith.constant 0 : index
    %0 = vector.load %arg0[%c0, %c0_0, %c0_1] : memref<2x16x1024xf32, #tpu.memory_space<vmem>>, vector<1x16x1024xf32>
    %1 = vector.shape_cast %0 : vector<1x16x1024xf32> to vector<16x1024xf32>
    %c1 = arith.constant 1 : index
    %c0_2 = arith.constant 0 : index
    %c0_3 = arith.constant 0 : index
    %2 = vector.load %arg0[%c1, %c0_2, %c0_3] : memref<2x16x1024xf32, #tpu.memory_space<vmem>>, vector<1x16x1024xf32>
    %3 = vector.shape_cast %2 : vector<1x16x1024xf32> to vector<16x1024xf32>
    %4 = arith.addf %1, %3 : vector<16x1024xf32>
    %c0_4 = arith.constant 0 : index
    %c0_5 = arith.constant 0 : index
    %5 = vector.load %arg1[%c0_4, %c0_5] : memref<1x1024xf32, #tpu.memory_space<vmem>>, vector<1x1024xf32>
    %6 = vector.broadcast %5 : vector<1x1024xf32> to vector<16x1024xf32>
    %7 = arith.addf %4, %6 : vector<16x1024xf32>
    %cst = arith.constant 0.000000e+00 : f32
    %8 = vector.broadcast %cst : f32 to vector<16x1024xf32>
    %9 = arith.maximumf %7, %8 : vector<16x1024xf32>
    %10 = vector.extract_strided_slice %9 {offsets = [0, 0], sizes = [8, 1024], strides = [1, 1]} : vector<16x1024xf32> to vector<8x1024xf32>
    %11 = vector.extract_strided_slice %9 {offsets = [8, 0], sizes = [8, 1024], strides = [1, 1]} : vector<16x1024xf32> to vector<8x1024xf32>
    %12 = arith.subf %10, %11 : vector<8x1024xf32>
    %13 = arith.mulf %12, %12 : vector<8x1024xf32>
    %cst_6 = arith.constant dense<0.000000e+00> : vector<8xf32>
    %14 = vector.multi_reduction <add>, %13, %cst_6 [1] : vector<8x1024xf32> to vector<8xf32>
    %15 = vector.shape_cast %14 : vector<8xf32> to vector<8x1xf32>
    %16 = math.sqrt %15 : vector<8x1xf32>
    %c0_7 = arith.constant 0 : index
    %c0_8 = arith.constant 0 : index
    %17 = vector.load %arg2[%c0_7, %c0_8] : memref<8x1xf32, #tpu.memory_space<vmem>>, vector<8x1xf32>
    tpu.vector_store %arg2[%c0_7, %c0_8], %16 {strides = array<i32>} : memref<8x1xf32, #tpu.memory_space<vmem>>, vector<8x1xf32>,
    return
  }
}

module attributes {stable_mosaic.version = 11 : i64} {
  func.func @_siamese_matmul_kernel(%arg0: i32, %arg1: i32, %arg2: memref<16x256xbf16, #tpu.memory_space<vmem>>, %arg3: memref<256x256xbf16, #tpu.memory_space<vmem>>, %arg4: memref<1x256xf32, #tpu.memory_space<vmem>>, %arg5: memref<256x1024xbf16, #tpu.memory_space<vmem>>, %arg6: memref<1x16x1024xf32, #tpu.memory_space<vmem>>, %arg7: memref<16x1024xf32, #tpu.memory_space<vmem>>) attributes {dimension_semantics = [#tpu.dimension_semantics<parallel>, #tpu.dimension_semantics<arbitrary>], iteration_bounds = array<i64: 2, 2>, scalar_prefetch = 0 : i64, scratch_operands = 1 : i64, tpu.core_type = #tpu.core_type<tc>, window_params = [{pipeline_mode = #tpu.pipeline_mode<synchronous>, transform_indices = @transform_0, window_bounds = array<i64: 16, 256>}, {transform_indices = @transform_1, window_bounds = array<i64: 256, 256>}, {transform_indices = @transform_2, window_bounds = array<i64: 1, 256>}, {transform_indices = @transform_3, window_bounds = array<i64: 256, 1024>}, {transform_indices = @transform_4, window_bounds = array<i64: 1, 16, 1024>}]} {
    %c0_i32 = arith.constant 0 : i32
    %0 = arith.cmpi eq, %arg1, %c0_i32 : i32
    %1 = arith.extui %0 : i1 to i32
    %c0_i32_0 = arith.constant 0 : i32
    %2 = arith.cmpi ne, %1, %c0_i32_0 : i32
    scf.if %2 {
      %cst_15 = arith.constant 0.000000e+00 : f32
      %20 = vector.broadcast %cst_15 : f32 to vector<16x1024xf32>
      %c0_16 = arith.constant 0 : index
      %c0_17 = arith.constant 0 : index
      %21 = vector.load %arg7[%c0_16, %c0_17] : memref<16x1024xf32, #tpu.memory_space<vmem>>, vector<16x1024xf32>
      tpu.vector_store %arg7[%c0_16, %c0_17], %20 {strides = array<i32>} : memref<16x1024xf32, #tpu.memory_space<vmem>>, vector<16x1024xf32>,
    } else {
    }
    %c0 = arith.constant 0 : index
    %c0_1 = arith.constant 0 : index
    %3 = vector.load %arg2[%c0, %c0_1] : memref<16x256xbf16, #tpu.memory_space<vmem>>, vector<16x256xbf16>
    %c0_2 = arith.constant 0 : index
    %c0_3 = arith.constant 0 : index
    %4 = vector.load %arg3[%c0_2, %c0_3] : memref<256x256xbf16, #tpu.memory_space<vmem>>, vector<256x256xbf16>
    %cst = arith.constant dense<0.000000e+00> : vector<16x256xf32>
    %5 = tpu.matmul %3, %4, %cst {dimension_numbers = #tpu.dot_dimension_numbers<[1], [0], [0], [1], [0, 0, 1, 1], [], []>} : vector<16x256xbf16>, vector<256x256xbf16>, vector<16x256xf32> -> vector<16x256xf32>
    %c0_4 = arith.constant 0 : index
    %c0_5 = arith.constant 0 : index
    %6 = vector.load %arg4[%c0_4, %c0_5] : memref<1x256xf32, #tpu.memory_space<vmem>>, vector<1x256xf32>
    %7 = vector.broadcast %6 : vector<1x256xf32> to vector<16x256xf32>
    %8 = arith.addf %5, %7 : vector<16x256xf32>
    %cst_6 = arith.constant 0.000000e+00 : f32
    %9 = vector.broadcast %cst_6 : f32 to vector<16x256xf32>
    %10 = arith.maximumf %8, %9 : vector<16x256xf32>
    %c0_7 = arith.constant 0 : index
    %c0_8 = arith.constant 0 : index
    %11 = vector.load %arg7[%c0_7, %c0_8] : memref<16x1024xf32, #tpu.memory_space<vmem>>, vector<16x1024xf32>
    %12 = arith.truncf %10 : vector<16x256xf32> to vector<16x256xbf16>
    %c0_9 = arith.constant 0 : index
    %c0_10 = arith.constant 0 : index
    %13 = vector.load %arg5[%c0_9, %c0_10] : memref<256x1024xbf16, #tpu.memory_space<vmem>>, vector<256x1024xbf16>
    %cst_11 = arith.constant dense<0.000000e+00> : vector<16x1024xf32>
    %14 = tpu.matmul %12, %13, %cst_11 {dimension_numbers = #tpu.dot_dimension_numbers<[1], [0], [0], [1], [0, 0, 1, 1], [], []>} : vector<16x256xbf16>, vector<256x1024xbf16>, vector<16x1024xf32> -> vector<16x1024xf32>
    %15 = arith.addf %11, %14 : vector<16x1024xf32>
    %c0_12 = arith.constant 0 : index
    %c0_13 = arith.constant 0 : index
    %16 = vector.load %arg7[%c0_12, %c0_13] : memref<16x1024xf32, #tpu.memory_space<vmem>>, vector<16x1024xf32>
    tpu.vector_store %arg7[%c0_12, %c0_13], %15 {strides = array<i32>} : memref<16x1024xf32, #tpu.memory_space<vmem>>, vector<16x1024xf32>,
    %c1_i32 = arith.constant 1 : i32
    %17 = arith.cmpi eq, %arg1, %c1_i32 : i32
    %18 = arith.extui %17 : i1 to i32
    %c0_i32_14 = arith.constant 0 : i32
    %19 = arith.cmpi ne, %18, %c0_i32_14 : i32
    scf.if %19 {
      %c0_15 = arith.constant 0 : index
      %c0_16 = arith.constant 0 : index
      %20 = vector.load %arg7[%c0_15, %c0_16] : memref<16x1024xf32, #tpu.memory_space<vmem>>, vector<16x1024xf32>
      %c0_17 = arith.constant 0 : index
      %c0_18 = arith.constant 0 : index
      %c0_19 = arith.constant 0 : index
      %21 = vector.load %arg6[%c0_17, %c0_18, %c0_19] : memref<1x16x1024xf32, #tpu.memory_space<vmem>>, vector<1x16x1024xf32>
      %22 = vector.shape_cast %21 : vector<1x16x1024xf32> to vector<16x1024xf32>
      %23 = vector.shape_cast %20 : vector<16x1024xf32> to vector<1x16x1024xf32>
      tpu.vector_store %arg6[%c0_17, %c0_18, %c0_19], %23 {strides = array<i32>} : memref<1x16x1024xf32, #tpu.memory_space<vmem>>, vector<1x16x1024xf32>,
    } else {
    }
    return
  }
  func.func @transform_0(%arg0: i32, %arg1: i32) -> (i32, i32) {
    %c0_i32 = arith.constant 0 : i32
    %c0_i32_0 = arith.constant 0 : i32
    %c0_i32_1 = arith.constant 0 : i32
    return %c0_i32, %c0_i32_0 : i32, i32
  }
  func.func @transform_1(%arg0: i32, %arg1: i32) -> (i32, i32) {
    %c2_i32 = arith.constant 2 : i32
    %0 = arith.muli %arg0, %c2_i32 : i32
    %1 = arith.addi %0, %arg1 : i32
    %c0_i32 = arith.constant 0 : i32
    %c0_i32_0 = arith.constant 0 : i32
    return %c0_i32, %1 : i32, i32
  }
  func.func @transform_2(%arg0: i32, %arg1: i32) -> (i32, i32) {
    %c2_i32 = arith.constant 2 : i32
    %0 = arith.muli %arg0, %c2_i32 : i32
    %1 = arith.addi %0, %arg1 : i32
    %c0_i32 = arith.constant 0 : i32
    %c0_i32_0 = arith.constant 0 : i32
    return %c0_i32, %1 : i32, i32
  }
  func.func @transform_3(%arg0: i32, %arg1: i32) -> (i32, i32) {
    %c2_i32 = arith.constant 2 : i32
    %0 = arith.muli %arg0, %c2_i32 : i32
    %1 = arith.addi %0, %arg1 : i32
    %c0_i32 = arith.constant 0 : i32
    %c0_i32_0 = arith.constant 0 : i32
    return %1, %c0_i32 : i32, i32
  }
  func.func @transform_4(%arg0: i32, %arg1: i32) -> (i32, i32, i32) {
    %c0_i32 = arith.constant 0 : i32
    %c0_i32_0 = arith.constant 0 : i32
    %c0_i32_1 = arith.constant 0 : i32
    return %arg0, %c0_i32, %c0_i32_0 : i32, i32, i32
  }
}

</mosaic_0001>

<llo_original>
// kernel: siamese_forward.3
$region0: #{siamese_forward.3}
  #allocation0 [shape = 'u32[]', space=smem, size = 0x4, offset = 0x4, fixed_abs, tag = 'smem constant byte address 0x4 - core index']
  #allocation1 [shape = 'u32[72,128]{1,0:T(1,128)}', space=vmem, size = 0x9000, scoped, tag = 'internal scratch']
  %s0 = inlined_call_operand.vmem [shape: f32[2,16,1024], index: 0, kind: input, shape index: {}]
  %s1 = inlined_call_operand.hbm [shape: f32[1,1024], index: 1, kind: input, shape index: {}]
  %s2 = inlined_call_operand.vmem [shape: f32[8,1], index: 2, kind: output, shape index: {}]
  %s3 = sld [smem:[#allocation0]]
  $region22: #{siamese_forward.3} parent=0
    _
  %s5 = ssub.s32 1, %s3
  %s6 = scalar_select 0, %s5, %s3
  $region1: #{siamese_forward.3} parent=0
    #allocation2 [shape = 'u8[4096]{0}', space=vmem, size = 0x1000, scoped, tag = 'input window, operand 1, single buffered']
    #allocation3 [shape = 's32[1]{0}', space=sflag, size = 0x4, scoped, tag = 'scoped memory for siamese_forward.3']
    %7 = vsyncpa [#allocation3], 0
    // Predicated region
    $region2: #{siamese_forward.3} parent=1 // pred_check
      _
    $region3: #{siamese_forward.3} parent=1 // pred_check_branch
      %9 = sbr.rel (0) target = $region5
    $region4: #{siamese_forward.3} parent=1 // pred_region
      _
    $region5: #{siamese_forward.3} parent=1 // pred_fallthru
      _
    // Predicated region
    $region6: #{siamese_forward.3} parent=1 // pred_check
      _
    $region7: #{siamese_forward.3} parent=1 // pred_check_branch
      %11 = sbr.rel (0) target = $region9
    $region8: #{siamese_forward.3} parent=1 // pred_region
      %13 = vsyncadd [#allocation3], 0
      %s15 = sshll.u32 %s1, 4
      %s16 = int_to_ptr.hbm [resolvable:$true] %s15
      %s17 = sshll.u32 [#allocation2], 4
      %s18 = int_to_ptr.vmem [resolvable:$true] %s17
      %20 = dma.hbm_to_vmem [thread:$0]  %s16, 128, %s18, [#allocation3]
    $region9: #{siamese_forward.3} parent=1 // pred_fallthru
      _
    // Predicated region
    $region10: #{siamese_forward.3} parent=1 // pred_check
      _
    $region11: #{siamese_forward.3} parent=1 // pred_check_branch
      %22 = sbr.rel (0) target = $region13
    $region12: #{siamese_forward.3} parent=1 // pred_region
      %24 = dma.done [#allocation3], 128
    $region13: #{siamese_forward.3} parent=1 // pred_fallthru
      _
    %v25 = vld [vmem:[%s0] sm:$0xff]
    %v26 = vld [vmem:[%s0 + $0x8] sm:$0xff]
    %v27 = vld [vmem:[%s0 + $0x10] sm:$0xff]
    %v28 = vld [vmem:[%s0 + $0x18] sm:$0xff]
    %v29 = vld [vmem:[%s0 + $0x20] sm:$0xff]
    %v30 = vld [vmem:[%s0 + $0x28] sm:$0xff]
    %v31 = vld [vmem:[%s0 + $0x30] sm:$0xff]
    %v32 = vld [vmem:[%s0 + $0x38] sm:$0xff]
    %v33 = vld [vmem:[%s0 + $0x40] sm:$0xff]
    %v34 = vld [vmem:[%s0 + $0x48] sm:$0xff]
    %v35 = vld [vmem:[%s0 + $0x50] sm:$0xff]
    %v36 = vld [vmem:[%s0 + $0x58] sm:$0xff]
    %v37 = vld [vmem:[%s0 + $0x60] sm:$0xff]
    %v38 = vld [vmem:[%s0 + $0x68] sm:$0xff]
    %v39 = vld [vmem:[%s0 + $0x70] sm:$0xff]
    %v40 = vld [vmem:[%s0 + $0x78] sm:$0xff]
    %s41 = scalar_lea.vmem %s0, 128
    %v42 = vld [vmem:[%s41] sm:$0xff]
    %v43 = vld [vmem:[%s41 + $0x8] sm:$0xff]
    %v44 = vld [vmem:[%s41 + $0x10] sm:$0xff]
    %v45 = vld [vmem:[%s41 + $0x18] sm:$0xff]
    %v46 = vld [vmem:[%s41 + $0x20] sm:$0xff]
    %v47 = vld [vmem:[%s41 + $0x28] sm:$0xff]
    %v48 = vld [vmem:[%s41 + $0x30] sm:$0xff]
    %v49 = vld [vmem:[%s41 + $0x38] sm:$0xff]
    %v50 = vld [vmem:[%s41 + $0x40] sm:$0xff]
    %v51 = vld [vmem:[%s41 + $0x48] sm:$0xff]
    %v52 = vld [vmem:[%s41 + $0x50] sm:$0xff]
    %v53 = vld [vmem:[%s41 + $0x58] sm:$0xff]
    %v54 = vld [vmem:[%s41 + $0x60] sm:$0xff]
    %v55 = vld [vmem:[%s41 + $0x68] sm:$0xff]
    %v56 = vld [vmem:[%s41 + $0x70] sm:$0xff]
    %v57 = vld [vmem:[%s41 + $0x78] sm:$0xff]
    %v58 = vadd.f32 %v25, %v42
    %v59 = vadd.f32 %v26, %v43
    %v60 = vadd.f32 %v27, %v44
    %v61 = vadd.f32 %v28, %v45
    %v62 = vadd.f32 %v29, %v46
    %v63 = vadd.f32 %v30, %v47
    %v64 = vadd.f32 %v31, %v48
    %v65 = vadd.f32 %v32, %v49
    %v66 = vadd.f32 %v33, %v50
    %v67 = vadd.f32 %v34, %v51
    %v68 = vadd.f32 %v35, %v52
    %v69 = vadd.f32 %v36, %v53
    %v70 = vadd.f32 %v37, %v54
    %v71 = vadd.f32 %v38, %v55
    %v72 = vadd.f32 %v39, %v56
    %v73 = vadd.f32 %v40, %v57
    %v74 = vld [vmem:[#allocation2] sm:$0xff]
    %v76 = vperm.slane %v74, 0
    %v77 = vperm.slane %v74, 1
    %v78 = vperm.slane %v74, 2
    %v79 = vperm.slane %v74, 3
    %v80 = vperm.slane %v74, 4
    %v81 = vperm.slane %v74, 5
    %v82 = vperm.slane %v74, 6
    %v83 = vperm.slane %v74, 7
    %v92 = vadd.f32 %v58, %v76
    %v93 = vadd.f32 %v59, %v77
    %v94 = vadd.f32 %v60, %v78
    %v95 = vadd.f32 %v61, %v79
    %v96 = vadd.f32 %v62, %v80
    %v97 = vadd.f32 %v63, %v81
    %v98 = vadd.f32 %v64, %v82
    %v99 = vadd.f32 %v65, %v83
    %v100 = vadd.f32 %v66, %v76
    %v101 = vadd.f32 %v67, %v77
    %v102 = vadd.f32 %v68, %v78
    %v103 = vadd.f32 %v69, %v79
    %v104 = vadd.f32 %v70, %v80
    %v105 = vadd.f32 %v71, %v81
    %v106 = vadd.f32 %v72, %v82
    %v107 = vadd.f32 %v73, %v83
    %v108 = vmax.f32 %v92, 0.0
    %v109 = vmax.f32 %v93, 0.0
    %v110 = vmax.f32 %v94, 0.0
    %v111 = vmax.f32 %v95, 0.0
    %v112 = vmax.f32 %v96, 0.0
    %v113 = vmax.f32 %v97, 0.0
    %v114 = vmax.f32 %v98, 0.0
    %v115 = vmax.f32 %v99, 0.0
    %v116 = vmax.f32 %v100, 0.0
    %v117 = vmax.f32 %v101, 0.0
    %v118 = vmax.f32 %v102, 0.0
    %v119 = vmax.f32 %v103, 0.0
    %v120 = vmax.f32 %v104, 0.0
    %v121 = vmax.f32 %v105, 0.0
    %v122 = vmax.f32 %v106, 0.0
    %v123 = vmax.f32 %v107, 0.0
    %v124 = vsub.f32 %v108, %v116
    %v125 = vsub.f32 %v109, %v117
    %v126 = vsub.f32 %v110, %v118
    %v127 = vsub.f32 %v111, %v119
    %v128 = vsub.f32 %v112, %v120
    %v129 = vsub.f32 %v113, %v121
    %v130 = vsub.f32 %v114, %v122
    %v131 = vsub.f32 %v115, %v123
    %v132 = vmul.f32 %v124, %v124
    %v133 = vmul.f32 %v125, %v125
    %v134 = vmul.f32 %v126, %v126
    %v135 = vmul.f32 %v127, %v127
    %v136 = vmul.f32 %v128, %v128
    %v137 = vmul.f32 %v129, %v129
    %v138 = vmul.f32 %v130, %v130
    %v139 = vmul.f32 %v131, %v131
    %v140 = vadd.f32 %v132, %v133
    %v141 = vadd.f32 %v140, %v134
    %v142 = vadd.f32 %v141, %v135
    %v143 = vadd.f32 %v142, %v136
    %v144 = vadd.f32 %v143, %v137
    %v145 = vadd.f32 %v144, %v138
    %v146 = vadd.f32 %v145, %v139
    %147 = vadd.xlane.f32.xlu0 %v146
    %v148 = vpop.xlane.xlu0 %147
    %v149 = vrsqrt.pop %v148
    %v150 = vmul.f32 %v149, %v148
    %v151 = vmul.f32 %v150, %v149
    %v152 = vmul.f32 0.5, %v151
    %v153 = vsub.f32 1.5, %v152
    %v154 = vmul.f32 %v149, %v153
    %v155 = vmul.f32 %v148, %v154
    %vm156 = vcmp.eq.f32.partialorder %v148, inf
    %v157 = vsel %vm156, %v148, %v155
    %vm158 = vcmp.eq.f32.partialorder %v148, 0.0
    %v159 = vand.u32 %v148, 2147483648
    %v160 = vsel %vm158, %v159, %v157
    %vm161 = vcmask 7168
    %162 = vst.msk [vmem:[%s2] sm:$0xff] %vm161, %v160
    // Predicated region
    $region14: #{siamese_forward.3} parent=1 // pred_check
      _
    $region15: #{siamese_forward.3} parent=1 // pred_check_branch
      %164 = sbr.rel (0) target = $region17
    $region16: #{siamese_forward.3} parent=1 // pred_region
      _
    $region17: #{siamese_forward.3} parent=1 // pred_fallthru
      _
    // Predicated region
    $region18: #{siamese_forward.3} parent=1 // pred_check
      _
    $region19: #{siamese_forward.3} parent=1 // pred_check_branch
      %166 = sbr.rel (0) target = $region21
    $region20: #{siamese_forward.3} parent=1 // pred_region
      _
    $region21: #{siamese_forward.3} parent=1 // pred_fallthru
      _
    %167 = vsyncpa [#allocation3], 1

// kernel: siamese_forward.2
$region0: #{siamese_forward.2}
  #allocation0 [shape = 'u32[]', space=smem, size = 0x4, offset = 0x4, fixed_abs, tag = 'smem constant byte address 0x4 - core index']
  #allocation1 [shape = 'u32[72,128]{1,0:T(1,128)}', space=vmem, size = 0x9000, scoped, tag = 'internal scratch']
  #allocation2 [shape = 'f32[16,1024]{1,0:T(8,128)}', space=vmem, size = 0x10000, scoped, tag = 'scratch operand']
  %s0 = inlined_call_operand.vmem [shape: bf16[16,256], index: 0, kind: input, shape index: {}]
  %s1 = inlined_call_operand.hbm [shape: bf16[256,1024], index: 1, kind: input, shape index: {}]
  %s2 = inlined_call_operand.hbm [shape: f32[1,1024], index: 2, kind: input, shape index: {}]
  %s3 = inlined_call_operand.hbm [shape: bf16[1024,1024], index: 3, kind: input, shape index: {}]
  %s4 = inlined_call_operand.vmem [shape: f32[2,16,1024], index: 4, kind: output, shape index: {}]
  %s5 = sld [smem:[#allocation0]]
  $region69: #{siamese_forward.2} parent=0
    _
  %s7 = ssub.s32 1, %s5
  %s8 = scalar_select 0, %s7, %s5
  $region1: #{siamese_forward.2} parent=0
    #allocation3 [shape = 'u8[262144]{0}', space=vmem, size = 0x40000, scoped, tag = 'input window, operand 1']
    #allocation4 [shape = 's32[2]{0}', space=sflag, size = 0x8, scoped, tag = 'scoped memory for siamese_forward.2']
    #allocation5 [shape = 'u8[2048]{0}', space=vmem, size = 0x800, scoped, tag = 'input window, operand 2']
    #allocation6 [shape = 's32[2]{0}', space=sflag, size = 0x8, scoped, tag = 'scoped memory for siamese_forward.2']
    #allocation7 [shape = 'u8[1048576]{0}', space=vmem, size = 0x100000, scoped, tag = 'input window, operand 3']
    %9 = vsyncpa [#allocation4], 0
    %s10 = scalar_lea.sflag [#allocation4], 1
    %11 = vsyncpa %s10, 0
    %12 = vsyncpa [#allocation6], 0
    %s13 = scalar_lea.sflag [#allocation6], 1
    %14 = vsyncpa %s13, 0
    loop: start=0, step=1, limit=6
    $region2: #{siamese_forward.2} parent=1 // loop_pre_header
      _
    $region3: #{siamese_forward.2} parent=1 // loop_header
      %s16 = sphi 0, %s20
      %p17 = scmp.ge.s32.totalorder %s16, 6
      %s23 = sphi 0, %s35
      %s24 = sphi 0, %s31
      %s25 = sphi 0, %s23
      %s26 = sphi 0, %s24
      %s27 = sphi 0, %s25
      %s28 = sphi 0, %s26
      %s36 = sphi 0, %s36
      %s38 = sphi 0, %s36
      %s39 = sphi 0, %s38
      %s53 = sphi 0, %s39
      %s63 = sphi 0, %s65
      %s66 = sphi 0, %s63
      %s67 = sphi 0, %s66
      %s83 = sphi 0, %s67
      %s93 = sphi 0, %s95
      %s96 = sphi 0, %s93
      %s97 = sphi 0, %s96
      %s113 = sphi 0, %s97
      %s123 = sphi 0, %s125
      %s126 = sphi 0, %s123
      %s127 = sphi 0, %s126
      %s143 = sphi 0, %s127
      %s149 = sphi 0, %s151
      %s152 = sphi 0, %s149
      %s153 = sphi 0, %s152
      %s169 = sphi 0, %s153
    $region4: #{siamese_forward.2} parent=1 // loop_header_branch
      %19 = sbr.rel (%p17) target = $region8
    $region5: #{siamese_forward.2} parent=1 // loop_body
      %s21 = ssub.s32 %s16, 1
      %s22 = ssub.s32 %s16, 2
      %s29 = sadd.s32 1, %s24
      %p30 = scmp.ge.s32.totalorder %s29, 2
      %s31 = scalar_select %p30, 0, %s29
      %s32 = sadd.s32 1, %s23
      %s33 = scalar_select %p30, %s32, %s23
      %p34 = scmp.ge.s32.totalorder %s33, 2
      %s35 = scalar_select %p34, 0, %s33
      %s37 = sadd.s32 %s36, 1
      %p40 = scmp.eq.s32.totalorder %s16, 3
      %p41 = scmp.ne.s32.totalorder %s36, %s38
      %p42 = scmp.eq.s32.totalorder %s16, 0
      %p43 = por %p41, %p42
      %p44 = scmp.ne.s32.totalorder %s36, %s38
      %p45 = scmp.eq.s32.totalorder %s21, 3
      %p46 = por %p44, %p45
      %p47 = scmp.ne.s32.totalorder %s38, %s39
      %p48 = scmp.eq.s32.totalorder %s21, 0
      %p49 = por %p47, %p48
      %p50 = scmp.ne.s32.totalorder %s38, %s39
      %p51 = scmp.eq.s32.totalorder %s22, 3
      %p52 = por %p50, %p51
      %p54 = scmp.ne.s32.totalorder %s39, %s53
      %p55 = scmp.eq.s32.totalorder %s22, 0
      %p56 = por %p54, %p55
      %s57 = smul.u32 %s23, 2
      %s58 = sadd.s32 %s57, %s24
      %s59 = smul.u32 %s35, 2
      %s60 = sadd.s32 %s59, %s31
      %s61 = ssub.s32 %s58, %s60
      %p62 = scmp.eq.s32.totalorder %s61, 0
      %s64 = sadd.s32 %s63, 1
      %s65 = scalar_select %p62, %s63, %s64
      %p68 = pneg %p62
      %p69 = scmp.eq.s32.totalorder %s16, 3
      %p70 = por %p68, %p69
      %p71 = scmp.ne.s32.totalorder %s63, %s66
      %p72 = scmp.eq.s32.totalorder %s16, 0
      %p73 = por %p71, %p72
      %p74 = scmp.ne.s32.totalorder %s63, %s66
      %p75 = scmp.eq.s32.totalorder %s21, 3
      %p76 = por %p74, %p75
      %p77 = scmp.ne.s32.totalorder %s66, %s67
      %p78 = scmp.eq.s32.totalorder %s21, 0
      %p79 = por %p77, %p78
      %p80 = scmp.ne.s32.totalorder %s66, %s67
      %p81 = scmp.eq.s32.totalorder %s22, 3
      %p82 = por %p80, %p81
      %p84 = scmp.ne.s32.totalorder %s67, %s83
      %p85 = scmp.eq.s32.totalorder %s22, 0
      %p86 = por %p84, %p85
      %s87 = smul.u32 %s23, 2
      %s88 = sadd.s32 %s87, %s24
      %s89 = smul.u32 %s35, 2
      %s90 = sadd.s32 %s89, %s31
      %s91 = ssub.s32 %s88, %s90
      %p92 = scmp.eq.s32.totalorder %s91, 0
      %s94 = sadd.s32 %s93, 1
      %s95 = scalar_select %p92, %s93, %s94
      %p98 = pneg %p92
      %p99 = scmp.eq.s32.totalorder %s16, 3
      %p100 = por %p98, %p99
      %p101 = scmp.ne.s32.totalorder %s93, %s96
      %p102 = scmp.eq.s32.totalorder %s16, 0
      %p103 = por %p101, %p102
      %p104 = scmp.ne.s32.totalorder %s93, %s96
      %p105 = scmp.eq.s32.totalorder %s21, 3
      %p106 = por %p104, %p105
      %p107 = scmp.ne.s32.totalorder %s96, %s97
      %p108 = scmp.eq.s32.totalorder %s21, 0
      %p109 = por %p107, %p108
      %p110 = scmp.ne.s32.totalorder %s96, %s97
      %p111 = scmp.eq.s32.totalorder %s22, 3
      %p112 = por %p110, %p111
      %p114 = scmp.ne.s32.totalorder %s97, %s113
      %p115 = scmp.eq.s32.totalorder %s22, 0
      %p116 = por %p114, %p115
      %s117 = smul.u32 %s23, 2
      %s118 = sadd.s32 %s117, %s24
      %s119 = smul.u32 %s35, 2
      %s120 = sadd.s32 %s119, %s31
      %s121 = ssub.s32 %s118, %s120
      %p122 = scmp.eq.s32.totalorder %s121, 0
      %s124 = sadd.s32 %s123, 1
      %s125 = scalar_select %p122, %s123, %s124
      %p128 = pneg %p122
      %p129 = scmp.eq.s32.totalorder %s16, 3
      %p130 = por %p128, %p129
      %p131 = scmp.ne.s32.totalorder %s123, %s126
      %p132 = scmp.eq.s32.totalorder %s16, 0
      %p133 = por %p131, %p132
      %p134 = scmp.ne.s32.totalorder %s123, %s126
      %p135 = scmp.eq.s32.totalorder %s21, 3
      %p136 = por %p134, %p135
      %p137 = scmp.ne.s32.totalorder %s126, %s127
      %p138 = scmp.eq.s32.totalorder %s21, 0
      %p139 = por %p137, %p138
      %p140 = scmp.ne.s32.totalorder %s126, %s127
      %p141 = scmp.eq.s32.totalorder %s22, 3
      %p142 = por %p140, %p141
      %p144 = scmp.ne.s32.totalorder %s127, %s143
      %p145 = scmp.eq.s32.totalorder %s22, 0
      %p146 = por %p144, %p145
      %s147 = ssub.s32 %s23, %s35
      %p148 = scmp.eq.s32.totalorder %s147, 0
      %s150 = sadd.s32 %s149, 1
      %s151 = scalar_select %p148, %s149, %s150
      %p154 = pneg %p148
      %p155 = scmp.eq.s32.totalorder %s16, 3
      %p156 = por %p154, %p155
      %p157 = scmp.ne.s32.totalorder %s149, %s152
      %p158 = scmp.eq.s32.totalorder %s16, 0
      %p159 = por %p157, %p158
      %p160 = scmp.ne.s32.totalorder %s149, %s152
      %p161 = scmp.eq.s32.totalorder %s21, 3
      %p162 = por %p160, %p161
      %p163 = scmp.ne.s32.totalorder %s152, %s153
      %p164 = scmp.eq.s32.totalorder %s21, 0
      %p165 = por %p163, %p164
      %p166 = scmp.ne.s32.totalorder %s152, %s153
      %p167 = scmp.eq.s32.totalorder %s22, 3
      %p168 = por %p166, %p167
      %p170 = scmp.ne.s32.totalorder %s153, %s169
      %p171 = scmp.eq.s32.totalorder %s22, 0
      %p172 = por %p170, %p171
      %p173 = scmp.le.s32.totalorder 1, %s16
      %p174 = scmp.lt.s32.totalorder %s16, 5
      %p175 = pnand %p173, %p174
      %p176 = pneg %p175
      // Predicated region
      $region9: #{siamese_forward.2} parent=5 // pred_check
        _
      $region10: #{siamese_forward.2} parent=5 // pred_check_branch
        %178 = sbr.rel (%p175) target = $region12
      $region11: #{siamese_forward.2} parent=5 // pred_region
        %s179 = ssub.s32 %s16, 1
        // Predicated region
        $region13: #{siamese_forward.2} parent=11 // pred_check
          %p180 = pneg %p49
        $region14: #{siamese_forward.2} parent=11 // pred_check_branch
          %182 = sbr.rel (%p180) target = $region16
        $region15: #{siamese_forward.2} parent=11 // pred_region
          _
        $region16: #{siamese_forward.2} parent=11 // pred_fallthru
          _
      $region12: #{siamese_forward.2} parent=5 // pred_fallthru
        _
      %p183 = scmp.lt.s32.totalorder %s16, 4
      // Predicated region
      $region17: #{siamese_forward.2} parent=5 // pred_check
        %p184 = pneg %p183
      $region18: #{siamese_forward.2} parent=5 // pred_check_branch
        %186 = sbr.rel (%p184) target = $region20
      $region19: #{siamese_forward.2} parent=5 // pred_region
        // Predicated region
        $region21: #{siamese_forward.2} parent=19 // pred_check
          %p187 = pneg %p73
        $region22: #{siamese_forward.2} parent=19 // pred_check_branch
          %189 = sbr.rel (%p187) target = $region24
        $region23: #{siamese_forward.2} parent=19 // pred_region
          %s190 = sand.u32 %s63, 1
          %s191 = scalar_lea.sflag [#allocation4], %s190
          %s192 = sand.u32 %s63, 1
          %s193 = smul.addr %s192, 256
          %s194 = scalar_lea.vmem [#allocation3], %s193
          %s195 = smul.u32 %s23, 2
          %s196 = sadd.s32 %s195, %s24
          %s197 = smul.u32 2, %s196
          %199 = vsyncadd %s191, 0
          %s200 = smul.addr %s197, 4
          %s201 = scalar_lea.hbm %s1, %s200
          %s202 = sshll.u32 %s201, 4
          %s203 = int_to_ptr.hbm [resolvable:$true] %s202
          %s204 = sshll.u32 %s194, 4
          %s205 = int_to_ptr.vmem [resolvable:$true] %s204
          %210 = dma.hbm_to_vmem [thread:$0]  %s203, 4096, %s205, %s191, 512, 128, 8
        $region24: #{siamese_forward.2} parent=19 // pred_fallthru
          _
        // Predicated region
        $region25: #{siamese_forward.2} parent=19 // pred_check
          %p211 = pneg %p103
        $region26: #{siamese_forward.2} parent=19 // pred_check_branch
          %213 = sbr.rel (%p211) target = $region28
        $region27: #{siamese_forward.2} parent=19 // pred_region
          %s214 = sand.u32 %s16, 1
          %s215 = scalar_lea.sflag [#allocation6], %s214
          %s216 = sand.u32 %s93, 1
          %s217 = smul.addr %s216, 2
          %s218 = scalar_lea.vmem [#allocation5], %s217
          %s219 = smul.u32 %s23, 2
          %s220 = sadd.s32 %s219, %s24
          %s221 = smul.u32 2, %s220
          %223 = vsyncadd %s215, 0
          %s224 = scalar_lea.hbm %s2, %s221
          %s226 = sshll.u32 %s224, 4
          %s227 = int_to_ptr.hbm [resolvable:$true] %s226
          %s228 = sshll.u32 %s218, 4
          %s229 = int_to_ptr.vmem [resolvable:$true] %s228
          %231 = dma.hbm_to_vmem [thread:$0]  %s227, 32, %s229, %s215
        $region28: #{siamese_forward.2} parent=19 // pred_fallthru
          _
        // Predicated region
        $region29: #{siamese_forward.2} parent=19 // pred_check
          %p232 = pneg %p133
        $region30: #{siamese_forward.2} parent=19 // pred_check_branch
          %234 = sbr.rel (%p232) target = $region32
        $region31: #{siamese_forward.2} parent=19 // pred_region
          %s235 = sand.u32 %s16, 1
          %s236 = scalar_lea.sflag [#allocation6], %s235
          %s237 = sand.u32 %s123, 1
          %s238 = smul.addr %s237, 1024
          %s239 = scalar_lea.vmem [#allocation7], %s238
          %s240 = smul.u32 %s23, 2
          %s241 = sadd.s32 %s240, %s24
          %s242 = smul.u32 32, %s241
          %244 = vsyncadd %s236, 0
          %s245 = smul.addr %s242, 8
          %s246 = smul.addr %s245, 4
          %s247 = scalar_lea.hbm %s3, %s246
          %s248 = sshll.u32 %s247, 4
          %s249 = int_to_ptr.hbm [resolvable:$true] %s248
          %s250 = sshll.u32 %s239, 4
          %s251 = int_to_ptr.vmem [resolvable:$true] %s250
          %256 = dma.hbm_to_vmem [thread:$0]  %s249, 16384, %s251, %s236, 512, 512, 32
        $region32: #{siamese_forward.2} parent=19 // pred_fallthru
          _
      $region20: #{siamese_forward.2} parent=5 // pred_fallthru
        _
      %p257 = scmp.le.s32.totalorder 1, %s16
      %p258 = scmp.lt.s32.totalorder %s16, 5
      %p259 = pnand %p257, %p258
      %p260 = pneg %p259
      // Predicated region
      $region33: #{siamese_forward.2} parent=5 // pred_check
        _
      $region34: #{siamese_forward.2} parent=5 // pred_check_branch
        %262 = sbr.rel (%p259) target = $region36
      $region35: #{siamese_forward.2} parent=5 // pred_region
        %s263 = ssub.s32 %s16, 1
        %s264 = sand.u32 %s66, 1
        %s265 = scalar_lea.sflag [#allocation4], %s264
        %s266 = sand.u32 %s66, 1
        %s267 = smul.addr %s266, 256
        %s268 = scalar_lea.vmem [#allocation3], %s267
        // Predicated region
        $region37: #{siamese_forward.2} parent=35 // pred_check
          %p269 = pneg %p79
        $region38: #{siamese_forward.2} parent=35 // pred_check_branch
          %271 = sbr.rel (%p269) target = $region40
        $region39: #{siamese_forward.2} parent=35 // pred_region
          %273 = dma.done %s265, 4096
        $region40: #{siamese_forward.2} parent=35 // pred_fallthru
          _
        %s274 = sand.u32 %s21, 1
        %s275 = scalar_lea.sflag [#allocation6], %s274
        %s276 = sand.u32 %s96, 1
        %s277 = smul.addr %s276, 2
        %s278 = scalar_lea.vmem [#allocation5], %s277
        // Predicated region
        $region41: #{siamese_forward.2} parent=35 // pred_check
          %p279 = pneg %p109
        $region42: #{siamese_forward.2} parent=35 // pred_check_branch
          %281 = sbr.rel (%p279) target = $region44
        $region43: #{siamese_forward.2} parent=35 // pred_region
          %283 = dma.done %s275, 32
        $region44: #{siamese_forward.2} parent=35 // pred_fallthru
          _
        %s284 = sand.u32 %s21, 1
        %s285 = scalar_lea.sflag [#allocation6], %s284
        %s286 = sand.u32 %s126, 1
        %s287 = smul.addr %s286, 1024
        %s288 = scalar_lea.vmem [#allocation7], %s287
        // Predicated region
        $region45: #{siamese_forward.2} parent=35 // pred_check
          %p289 = pneg %p139
        $region46: #{siamese_forward.2} parent=35 // pred_check_branch
          %291 = sbr.rel (%p289) target = $region48
        $region47: #{siamese_forward.2} parent=35 // pred_region
          %293 = dma.done %s285, 16384
        $region48: #{siamese_forward.2} parent=35 // pred_fallthru
          _
        %p294 = pneg %p49
        %p295 = pneg %p46
        %s296 = sand.u32 %s66, 1
        %s297 = scalar_lea.sflag [#allocation4], %s296
        %s298 = sand.u32 %s66, 1
        %s299 = smul.addr %s298, 256
        %s300 = scalar_lea.vmem [#allocation3], %s299
        %p301 = pneg %p79
        %p302 = pneg %p76
        %s303 = sand.u32 %s21, 1
        %s304 = scalar_lea.sflag [#allocation6], %s303
        %s305 = sand.u32 %s96, 1
        %s306 = smul.addr %s305, 2
        %s307 = scalar_lea.vmem [#allocation5], %s306
        %p308 = pneg %p109
        %p309 = pneg %p106
        %s310 = sand.u32 %s21, 1
        %s311 = scalar_lea.sflag [#allocation6], %s310
        %s312 = sand.u32 %s126, 1
        %s313 = smul.addr %s312, 1024
        %s314 = scalar_lea.vmem [#allocation7], %s313
        %p315 = pneg %p139
        %p316 = pneg %p136
        %p317 = pneg %p165
        %p318 = pneg %p162
        %p319 = scmp.lt.s32.totalorder %s25, 1
        %s320 = scalar_select %p319, %s25, 1
        %s321 = smul.addr %s320, 16
        %s322 = smul.addr %s321, 8
        %s323 = scalar_lea.vmem %s4, %s322
        %s324 = smul.u32 %s25, 2
        %s325 = sadd.s32 %s324, %s26
        %s326 = smul.u32 2, %s325
        %s327 = smul.u32 %s25, 2
        %s328 = sadd.s32 %s327, %s26
        %s329 = smul.u32 2, %s328
        %s330 = smul.u32 %s25, 2
        %s331 = sadd.s32 %s330, %s26
        %s332 = smul.u32 32, %s331
        %p333 = scmp.lt.s32.totalorder %s25, 1
        %s334 = scalar_select %p333, %s25, 1
        %s335 = smul.addr %s334, 16
        %s336 = smul.addr %s335, 8
        %s337 = scalar_lea.vmem %s4, %s336
        %p338 = scmp.eq.s32.totalorder %s26, 0
        // Predicated region
        $region49: #{siamese_forward.2} parent=35 // pred_check
          %p339 = pneg %p338
        $region50: #{siamese_forward.2} parent=35 // pred_check_branch
          %341 = sbr.rel (%p339) target = $region52
        $region51: #{siamese_forward.2} parent=35 // pred_region
          %342 = vst [vmem:[#allocation2] sm:$0xff] 0.0
          %343 = vst [vmem:[#allocation2 + $0x8] sm:$0xff] 0.0
          %344 = vst [vmem:[#allocation2 + $0x10] sm:$0xff] 0.0
          %345 = vst [vmem:[#allocation2 + $0x18] sm:$0xff] 0.0
          %346 = vst [vmem:[#allocation2 + $0x20] sm:$0xff] 0.0
          %347 = vst [vmem:[#allocation2 + $0x28] sm:$0xff] 0.0
          %348 = vst [vmem:[#allocation2 + $0x30] sm:$0xff] 0.0
          %349 = vst [vmem:[#allocation2 + $0x38] sm:$0xff] 0.0
          %350 = vst [vmem:[#allocation2 + $0x40] sm:$0xff] 0.0
          %351 = vst [vmem:[#allocation2 + $0x48] sm:$0xff] 0.0
          %352 = vst [vmem:[#allocation2 + $0x50] sm:$0xff] 0.0
          %353 = vst [vmem:[#allocation2 + $0x58] sm:$0xff] 0.0
          %354 = vst [vmem:[#allocation2 + $0x60] sm:$0xff] 0.0
          %355 = vst [vmem:[#allocation2 + $0x68] sm:$0xff] 0.0
          %356 = vst [vmem:[#allocation2 + $0x70] sm:$0xff] 0.0
          %357 = vst [vmem:[#allocation2 + $0x78] sm:$0xff] 0.0
        $region52: #{siamese_forward.2} parent=35 // pred_fallthru
          _
        %v358 = vld [vmem:[%s0] sm:$0xff]
        %v359 = vld [vmem:[%s0 + $0x8] sm:$0xff]
        %v360 = vld [vmem:[%s268] sm:$0xff]
        %v361 = vld [vmem:[%s268 + $0x8] sm:$0xff]
        %v362 = vld [vmem:[%s268 + $0x10] sm:$0xff]
        %v363 = vld [vmem:[%s268 + $0x18] sm:$0xff]
        %v364 = vld [vmem:[%s268 + $0x20] sm:$0xff]
        %v365 = vld [vmem:[%s268 + $0x28] sm:$0xff]
        %v366 = vld [vmem:[%s268 + $0x30] sm:$0xff]
        %v367 = vld [vmem:[%s268 + $0x38] sm:$0xff]
        %v368 = vld [vmem:[%s268 + $0x40] sm:$0xff]
        %v369 = vld [vmem:[%s268 + $0x48] sm:$0xff]
        %v370 = vld [vmem:[%s268 + $0x50] sm:$0xff]
        %v371 = vld [vmem:[%s268 + $0x58] sm:$0xff]
        %v372 = vld [vmem:[%s268 + $0x60] sm:$0xff]
        %v373 = vld [vmem:[%s268 + $0x68] sm:$0xff]
        %v374 = vld [vmem:[%s268 + $0x70] sm:$0xff]
        %v375 = vld [vmem:[%s268 + $0x78] sm:$0xff]
        %v376 = vld [vmem:[%s268 + $0x80] sm:$0xff]
        %v377 = vld [vmem:[%s268 + $0x88] sm:$0xff]
        %v378 = vld [vmem:[%s268 + $0x90] sm:$0xff]
        %v379 = vld [vmem:[%s268 + $0x98] sm:$0xff]
        %v380 = vld [vmem:[%s268 + $0xa0] sm:$0xff]
        %v381 = vld [vmem:[%s268 + $0xa8] sm:$0xff]
        %v382 = vld [vmem:[%s268 + $0xb0] sm:$0xff]
        %v383 = vld [vmem:[%s268 + $0xb8] sm:$0xff]
        %v384 = vld [vmem:[%s268 + $0xc0] sm:$0xff]
        %v385 = vld [vmem:[%s268 + $0xc8] sm:$0xff]
        %v386 = vld [vmem:[%s268 + $0xd0] sm:$0xff]
        %v387 = vld [vmem:[%s268 + $0xd8] sm:$0xff]
        %v388 = vld [vmem:[%s268 + $0xe0] sm:$0xff]
        %v389 = vld [vmem:[%s268 + $0xe8] sm:$0xff]
        %v390 = vld [vmem:[%s268 + $0xf0] sm:$0xff]
        %v391 = vld [vmem:[%s268 + $0xf8] sm:$0xff]
        %v392 = vld [vmem:[%s278] sm:$0x3]
        %v394 = vperm.slane %v392, 0
        %v395 = vperm.slane %v392, 1
        %v400 = vunpack.c.l.b16 %v358
        %v401 = vunpack.c.h.b16 %v358
        %v402 = vunpack.c.l.b16 %v359
        %v403 = vunpack.c.h.b16 %v359
        %v404 = vpack.c.b16 %v402, %v400
        %v405 = vpack.c.b16 %v403, %v401
        %v440 = vunpack.c.l.b16 %v360
        %v441 = vunpack.c.h.b16 %v360
        %v442 = vunpack.c.l.b16 %v361
        %v443 = vunpack.c.h.b16 %v361
        %v444 = vunpack.c.l.b16 %v362
        %v445 = vunpack.c.h.b16 %v362
        %v446 = vunpack.c.l.b16 %v363
        %v447 = vunpack.c.h.b16 %v363
        %v448 = vunpack.c.l.b16 %v364
        %v449 = vunpack.c.h.b16 %v364
        %v450 = vunpack.c.l.b16 %v365
        %v451 = vunpack.c.h.b16 %v365
        %v452 = vunpack.c.l.b16 %v366
        %v453 = vunpack.c.h.b16 %v366
        %v454 = vunpack.c.l.b16 %v367
        %v455 = vunpack.c.h.b16 %v367
        %v456 = vunpack.c.l.b16 %v368
        %v457 = vunpack.c.h.b16 %v368
        %v458 = vunpack.c.l.b16 %v369
        %v459 = vunpack.c.h.b16 %v369
        %v460 = vunpack.c.l.b16 %v370
        %v461 = vunpack.c.h.b16 %v370
        %v462 = vunpack.c.l.b16 %v371
        %v463 = vunpack.c.h.b16 %v371
        %v464 = vunpack.c.l.b16 %v372
        %v465 = vunpack.c.h.b16 %v372
        %v466 = vunpack.c.l.b16 %v373
        %v467 = vunpack.c.h.b16 %v373
        %v468 = vunpack.c.l.b16 %v374
        %v469 = vunpack.c.h.b16 %v374
        %v470 = vunpack.c.l.b16 %v375
        %v471 = vunpack.c.h.b16 %v375
        %v472 = vunpack.c.l.b16 %v376
        %v473 = vunpack.c.h.b16 %v376
        %v474 = vunpack.c.l.b16 %v377
        %v475 = vunpack.c.h.b16 %v377
        %v476 = vunpack.c.l.b16 %v378
        %v477 = vunpack.c.h.b16 %v378
        %v478 = vunpack.c.l.b16 %v379
        %v479 = vunpack.c.h.b16 %v379
        %v480 = vunpack.c.l.b16 %v380
        %v481 = vunpack.c.h.b16 %v380
        %v482 = vunpack.c.l.b16 %v381
        %v483 = vunpack.c.h.b16 %v381
        %v484 = vunpack.c.l.b16 %v382
        %v485 = vunpack.c.h.b16 %v382
        %v486 = vunpack.c.l.b16 %v383
        %v487 = vunpack.c.h.b16 %v383
        %v488 = vunpack.c.l.b16 %v384
        %v489 = vunpack.c.h.b16 %v384
        %v490 = vunpack.c.l.b16 %v385
        %v491 = vunpack.c.h.b16 %v385
        %v492 = vunpack.c.l.b16 %v386
        %v493 = vunpack.c.h.b16 %v386
        %v494 = vunpack.c.l.b16 %v387
        %v495 = vunpack.c.h.b16 %v387
        %v496 = vunpack.c.l.b16 %v388
        %v497 = vunpack.c.h.b16 %v388
        %v498 = vunpack.c.l.b16 %v389
        %v499 = vunpack.c.h.b16 %v389
        %v500 = vunpack.c.l.b16 %v390
        %v501 = vunpack.c.h.b16 %v390
        %v502 = vunpack.c.l.b16 %v391
        %v503 = vunpack.c.h.b16 %v391
        %v504 = vpack.c.b16 %v442, %v440
        %v505 = vpack.c.b16 %v443, %v441
        %v506 = vpack.c.b16 %v446, %v444
        %v507 = vpack.c.b16 %v447, %v445
        %v508 = vpack.c.b16 %v450, %v448
        %v509 = vpack.c.b16 %v451, %v449
        %v510 = vpack.c.b16 %v454, %v452
        %v511 = vpack.c.b16 %v455, %v453
        %v512 = vpack.c.b16 %v458, %v456
        %v513 = vpack.c.b16 %v459, %v457
        %v514 = vpack.c.b16 %v462, %v460
        %v515 = vpack.c.b16 %v463, %v461
        %v516 = vpack.c.b16 %v466, %v464
        %v517 = vpack.c.b16 %v467, %v465
        %v518 = vpack.c.b16 %v470, %v468
        %v519 = vpack.c.b16 %v471, %v469
        %v520 = vpack.c.b16 %v474, %v472
        %v521 = vpack.c.b16 %v475, %v473
        %v522 = vpack.c.b16 %v478, %v476
        %v523 = vpack.c.b16 %v479, %v477
        %v524 = vpack.c.b16 %v482, %v480
        %v525 = vpack.c.b16 %v483, %v481
        %v526 = vpack.c.b16 %v486, %v484
        %v527 = vpack.c.b16 %v487, %v485
        %v528 = vpack.c.b16 %v490, %v488
        %v529 = vpack.c.b16 %v491, %v489
        %v530 = vpack.c.b16 %v494, %v492
        %v531 = vpack.c.b16 %v495, %v493
        %v532 = vpack.c.b16 %v498, %v496
        %v533 = vpack.c.b16 %v499, %v497
        %v534 = vpack.c.b16 %v502, %v500
        %v535 = vpack.c.b16 %v503, %v501
        %568 = vmatpush.bf16.msra.mxu0 %v518
        %569 = vmatpush.bf16.msra.mxu0 %v516
        %570 = vmatpush.bf16.msra.mxu0 %v514
        %571 = vmatpush.bf16.msra.mxu0 %v512
        %572 = vmatpush.bf16.msra.mxu0 %v510
        %573 = vmatpush.bf16.msra.mxu0 %v508
        %574 = vmatpush.bf16.msra.mxu0 %v506
        %575 = vmatpush.bf16.msra.mxu0 %v504
        %576 = vmatmul.bf16.gmra.mxu0 %v404
        %v577 = vpop.f32.mrf.mxu0
        %v578 = vadd.f32 %v394, %v577
        %v579 = vpop.f32.mrf.mxu0
        %v580 = vadd.f32 %v394, %v579
        %581 = vdwg.mxu0
        %582 = vmatpush.bf16.msra.mxu0 %v534
        %583 = vmatpush.bf16.msra.mxu0 %v532
        %584 = vmatpush.bf16.msra.mxu0 %v530
        %585 = vmatpush.bf16.msra.mxu0 %v528
        %586 = vmatpush.bf16.msra.mxu0 %v526
        %587 = vmatpush.bf16.msra.mxu0 %v524
        %588 = vmatpush.bf16.msra.mxu0 %v522
        %589 = vmatpush.bf16.msra.mxu0 %v520
        %590 = vmatmul.bf16.gmra.mxu0 %v405
        %v591 = vpop.f32.mrf.mxu0
        %v592 = vadd.f32 %v578, %v591
        %v593 = vpop.f32.mrf.mxu0
        %v594 = vadd.f32 %v580, %v593
        %595 = vdwg.mxu0
        %596 = vmatpush.bf16.msra.mxu0 %v519
        %597 = vmatpush.bf16.msra.mxu0 %v517
        %598 = vmatpush.bf16.msra.mxu0 %v515
        %599 = vmatpush.bf16.msra.mxu0 %v513
        %600 = vmatpush.bf16.msra.mxu0 %v511
        %601 = vmatpush.bf16.msra.mxu0 %v509
        %602 = vmatpush.bf16.msra.mxu0 %v507
        %603 = vmatpush.bf16.msra.mxu0 %v505
        %604 = vmatmul.bf16.gmra.mxu0 %v404
        %v605 = vpop.f32.mrf.mxu0
        %v606 = vadd.f32 %v395, %v605
        %v607 = vpop.f32.mrf.mxu0
        %v608 = vadd.f32 %v395, %v607
        %609 = vdwg.mxu0
        %610 = vmatpush.bf16.msra.mxu0 %v535
        %611 = vmatpush.bf16.msra.mxu0 %v533
        %612 = vmatpush.bf16.msra.mxu0 %v531
        %613 = vmatpush.bf16.msra.mxu0 %v529
        %614 = vmatpush.bf16.msra.mxu0 %v527
        %615 = vmatpush.bf16.msra.mxu0 %v525
        %616 = vmatpush.bf16.msra.mxu0 %v523
        %617 = vmatpush.bf16.msra.mxu0 %v521
        %618 = vmatmul.bf16.gmra.mxu0 %v405
        %v619 = vpop.f32.mrf.mxu0
        %v620 = vadd.f32 %v606, %v619
        %v621 = vpop.f32.mrf.mxu0
        %v622 = vadd.f32 %v608, %v621
        %623 = vdwg.mxu0
        %v624 = vmax.f32 %v592, 0.0
        %v625 = vmax.f32 %v620, 0.0
        %v626 = vmax.f32 %v594, 0.0
        %v627 = vmax.f32 %v622, 0.0
        %v628 = vld [vmem:[#allocation2] sm:$0xff]
        %v629 = vld [vmem:[#allocation2 + $0x8] sm:$0xff]
        %v630 = vld [vmem:[#allocation2 + $0x10] sm:$0xff]
        %v631 = vld [vmem:[#allocation2 + $0x18] sm:$0xff]
        %v632 = vld [vmem:[#allocation2 + $0x20] sm:$0xff]
        %v633 = vld [vmem:[#allocation2 + $0x28] sm:$0xff]
        %v634 = vld [vmem:[#allocation2 + $0x30] sm:$0xff]
        %v635 = vld [vmem:[#allocation2 + $0x38] sm:$0xff]
        %v636 = vld [vmem:[#allocation2 + $0x40] sm:$0xff]
        %v637 = vld [vmem:[#allocation2 + $0x48] sm:$0xff]
        %v638 = vld [vmem:[#allocation2 + $0x50] sm:$0xff]
        %v639 = vld [vmem:[#allocation2 + $0x58] sm:$0xff]
        %v640 = vld [vmem:[#allocation2 + $0x60] sm:$0xff]
        %v641 = vld [vmem:[#allocation2 + $0x68] sm:$0xff]
        %v642 = vld [vmem:[#allocation2 + $0x70] sm:$0xff]
        %v643 = vld [vmem:[#allocation2 + $0x78] sm:$0xff]
        %v644 = vpack.c.bf16 %v626, %v624
        %v645 = vpack.c.bf16 %v627, %v625
        %v646 = vld [vmem:[%s288] sm:$0xff]
        %v647 = vld [vmem:[%s288 + $0x8] sm:$0xff]
        %v648 = vld [vmem:[%s288 + $0x10] sm:$0xff]
        %v649 = vld [vmem:[%s288 + $0x18] sm:$0xff]
        %v650 = vld [vmem:[%s288 + $0x20] sm:$0xff]
        %v651 = vld [vmem:[%s288 + $0x28] sm:$0xff]
        %v652 = vld [vmem:[%s288 + $0x30] sm:$0xff]
        %v653 = vld [vmem:[%s288 + $0x38] sm:$0xff]
        %v654 = vld [vmem:[%s288 + $0x40] sm:$0xff]
        %v655 = vld [vmem:[%s288 + $0x48] sm:$0xff]
        %v656 = vld [vmem:[%s288 + $0x50] sm:$0xff]
        %v657 = vld [vmem:[%s288 + $0x58] sm:$0xff]
        %v658 = vld [vmem:[%s288 + $0x60] sm:$0xff]
        %v659 = vld [vmem:[%s288 + $0x68] sm:$0xff]
        %v660 = vld [vmem:[%s288 + $0x70] sm:$0xff]
        %v661 = vld [vmem:[%s288 + $0x78] sm:$0xff]
        %v662 = vld [vmem:[%s288 + $0x80] sm:$0xff]
        %v663 = vld [vmem:[%s288 + $0x88] sm:$0xff]
        %v664 = vld [vmem:[%s288 + $0x90] sm:$0xff]
        %v665 = vld [vmem:[%s288 + $0x98] sm:$0xff]
        %v666 = vld [vmem:[%s288 + $0xa0] sm:$0xff]
        %v667 = vld [vmem:[%s288 + $0xa8] sm:$0xff]
        %v668 = vld [vmem:[%s288 + $0xb0] sm:$0xff]
        %v669 = vld [vmem:[%s288 + $0xb8] sm:$0xff]
        %v670 = vld [vmem:[%s288 + $0xc0] sm:$0xff]
        %v671 = vld [vmem:[%s288 + $0xc8] sm:$0xff]
        %v672 = vld [vmem:[%s288 + $0xd0] sm:$0xff]
        %v673 = vld [vmem:[%s288 + $0xd8] sm:$0xff]
        %v674 = vld [vmem:[%s288 + $0xe0] sm:$0xff]
        %v675 = vld [vmem:[%s288 + $0xe8] sm:$0xff]
        %v676 = vld [vmem:[%s288 + $0xf0] sm:$0xff]
        %v677 = vld [vmem:[%s288 + $0xf8] sm:$0xff]
        %v678 = vld [vmem:[%s288 + $0x100] sm:$0xff]
        %v679 = vld [vmem:[%s288 + $0x108] sm:$0xff]
        %v680 = vld [vmem:[%s288 + $0x110] sm:$0xff]
        %v681 = vld [vmem:[%s288 + $0x118] sm:$0xff]
        %v682 = vld [vmem:[%s288 + $0x120] sm:$0xff]
        %v683 = vld [vmem:[%s288 + $0x128] sm:$0xff]
        %v684 = vld [vmem:[%s288 + $0x130] sm:$0xff]
        %v685 = vld [vmem:[%s288 + $0x138] sm:$0xff]
        %v686 = vld [vmem:[%s288 + $0x140] sm:$0xff]
        %v687 = vld [vmem:[%s288 + $0x148] sm:$0xff]
        %v688 = vld [vmem:[%s288 + $0x150] sm:$0xff]
        %v689 = vld [vmem:[%s288 + $0x158] sm:$0xff]
        %v690 = vld [vmem:[%s288 + $0x160] sm:$0xff]
        %v691 = vld [vmem:[%s288 + $0x168] sm:$0xff]
        %v692 = vld [vmem:[%s288 + $0x170] sm:$0xff]
        %v693 = vld [vmem:[%s288 + $0x178] sm:$0xff]
        %v694 = vld [vmem:[%s288 + $0x180] sm:$0xff]
        %v695 = vld [vmem:[%s288 + $0x188] sm:$0xff]
        %v696 = vld [vmem:[%s288 + $0x190] sm:$0xff]
        %v697 = vld [vmem:[%s288 + $0x198] sm:$0xff]
        %v698 = vld [vmem:[%s288 + $0x1a0] sm:$0xff]
        %v699 = vld [vmem:[%s288 + $0x1a8] sm:$0xff]
        %v700 = vld [vmem:[%s288 + $0x1b0] sm:$0xff]
        %v701 = vld [vmem:[%s288 + $0x1b8] sm:$0xff]
        %v702 = vld [vmem:[%s288 + $0x1c0] sm:$0xff]
        %v703 = vld [vmem:[%s288 + $0x1c8] sm:$0xff]
        %v704 = vld [vmem:[%s288 + $0x1d0] sm:$0xff]
        %v705 = vld [vmem:[%s288 + $0x1d8] sm:$0xff]
        %v706 = vld [vmem:[%s288 + $0x1e0] sm:$0xff]
        %v707 = vld [vmem:[%s288 + $0x1e8] sm:$0xff]
        %v708 = vld [vmem:[%s288 + $0x1f0] sm:$0xff]
        %v709 = vld [vmem:[%s288 + $0x1f8] sm:$0xff]
        %v710 = vld [vmem:[%s288 + $0x200] sm:$0xff]
        %v711 = vld [vmem:[%s288 + $0x208] sm:$0xff]
        %v712 = vld [vmem:[%s288 + $0x210] sm:$0xff]
        %v713 = vld [vmem:[%s288 + $0x218] sm:$0xff]
        %v714 = vld [vmem:[%s288 + $0x220] sm:$0xff]
        %v715 = vld [vmem:[%s288 + $0x228] sm:$0xff]
        %v716 = vld [vmem:[%s288 + $0x230] sm:$0xff]
        %v717 = vld [vmem:[%s288 + $0x238] sm:$0xff]
        %v718 = vld [vmem:[%s288 + $0x240] sm:$0xff]
        %v719 = vld [vmem:[%s288 + $0x248] sm:$0xff]
        %v720 = vld [vmem:[%s288 + $0x250] sm:$0xff]
        %v721 = vld [vmem:[%s288 + $0x258] sm:$0xff]
        %v722 = vld [vmem:[%s288 + $0x260] sm:$0xff]
        %v723 = vld [vmem:[%s288 + $0x268] sm:$0xff]
        %v724 = vld [vmem:[%s288 + $0x270] sm:$0xff]
        %v725 = vld [vmem:[%s288 + $0x278] sm:$0xff]
        %v726 = vld [vmem:[%s288 + $0x280] sm:$0xff]
        %v727 = vld [vmem:[%s288 + $0x288] sm:$0xff]
        %v728 = vld [vmem:[%s288 + $0x290] sm:$0xff]
        %v729 = vld [vmem:[%s288 + $0x298] sm:$0xff]
        %v730 = vld [vmem:[%s288 + $0x2a0] sm:$0xff]
        %v731 = vld [vmem:[%s288 + $0x2a8] sm:$0xff]
        %v732 = vld [vmem:[%s288 + $0x2b0] sm:$0xff]
        %v733 = vld [vmem:[%s288 + $0x2b8] sm:$0xff]
        %v734 = vld [vmem:[%s288 + $0x2c0] sm:$0xff]
        %v735 = vld [vmem:[%s288 + $0x2c8] sm:$0xff]
        %v736 = vld [vmem:[%s288 + $0x2d0] sm:$0xff]
        %v737 = vld [vmem:[%s288 + $0x2d8] sm:$0xff]
        %v738 = vld [vmem:[%s288 + $0x2e0] sm:$0xff]
        %v739 = vld [vmem:[%s288 + $0x2e8] sm:$0xff]
        %v740 = vld [vmem:[%s288 + $0x2f0] sm:$0xff]
        %v741 = vld [vmem:[%s288 + $0x2f8] sm:$0xff]
        %v742 = vld [vmem:[%s288 + $0x300] sm:$0xff]
        %v743 = vld [vmem:[%s288 + $0x308] sm:$0xff]
        %v744 = vld [vmem:[%s288 + $0x310] sm:$0xff]
        %v745 = vld [vmem:[%s288 + $0x318] sm:$0xff]
        %v746 = vld [vmem:[%s288 + $0x320] sm:$0xff]
        %v747 = vld [vmem:[%s288 + $0x328] sm:$0xff]
        %v748 = vld [vmem:[%s288 + $0x330] sm:$0xff]
        %v749 = vld [vmem:[%s288 + $0x338] sm:$0xff]
        %v750 = vld [vmem:[%s288 + $0x340] sm:$0xff]
        %v751 = vld [vmem:[%s288 + $0x348] sm:$0xff]
        %v752 = vld [vmem:[%s288 + $0x350] sm:$0xff]
        %v753 = vld [vmem:[%s288 + $0x358] sm:$0xff]
        %v754 = vld [vmem:[%s288 + $0x360] sm:$0xff]
        %v755 = vld [vmem:[%s288 + $0x368] sm:$0xff]
        %v756 = vld [vmem:[%s288 + $0x370] sm:$0xff]
        %v757 = vld [vmem:[%s288 + $0x378] sm:$0xff]
        %v758 = vld [vmem:[%s288 + $0x380] sm:$0xff]
        %v759 = vld [vmem:[%s288 + $0x388] sm:$0xff]
        %v760 = vld [vmem:[%s288 + $0x390] sm:$0xff]
        %v761 = vld [vmem:[%s288 + $0x398] sm:$0xff]
        %v762 = vld [vmem:[%s288 + $0x3a0] sm:$0xff]
        %v763 = vld [vmem:[%s288 + $0x3a8] sm:$0xff]
        %v764 = vld [vmem:[%s288 + $0x3b0] sm:$0xff]
        %v765 = vld [vmem:[%s288 + $0x3b8] sm:$0xff]
        %v766 = vld [vmem:[%s288 + $0x3c0] sm:$0xff]
        %v767 = vld [vmem:[%s288 + $0x3c8] sm:$0xff]
        %v768 = vld [vmem:[%s288 + $0x3d0] sm:$0xff]
        %v769 = vld [vmem:[%s288 + $0x3d8] sm:$0xff]
        %v770 = vld [vmem:[%s288 + $0x3e0] sm:$0xff]
        %v771 = vld [vmem:[%s288 + $0x3e8] sm:$0xff]
        %v772 = vld [vmem:[%s288 + $0x3f0] sm:$0xff]
        %v773 = vld [vmem:[%s288 + $0x3f8] sm:$0xff]
        %v902 = vunpack.c.l.b16 %v646
        %v903 = vunpack.c.h.b16 %v646
        %v904 = vunpack.c.l.b16 %v647
        %v905 = vunpack.c.h.b16 %v647
        %v906 = vunpack.c.l.b16 %v648
        %v907 = vunpack.c.h.b16 %v648
        %v908 = vunpack.c.l.b16 %v649
        %v909 = vunpack.c.h.b16 %v649
        %v910 = vunpack.c.l.b16 %v650
        %v911 = vunpack.c.h.b16 %v650
        %v912 = vunpack.c.l.b16 %v651
        %v913 = vunpack.c.h.b16 %v651
        %v914 = vunpack.c.l.b16 %v652
        %v915 = vunpack.c.h.b16 %v652
        %v916 = vunpack.c.l.b16 %v653
        %v917 = vunpack.c.h.b16 %v653
        %v918 = vunpack.c.l.b16 %v654
        %v919 = vunpack.c.h.b16 %v654
        %v920 = vunpack.c.l.b16 %v655
        %v921 = vunpack.c.h.b16 %v655
        %v922 = vunpack.c.l.b16 %v656
        %v923 = vunpack.c.h.b16 %v656
        %v924 = vunpack.c.l.b16 %v657
        %v925 = vunpack.c.h.b16 %v657
        %v926 = vunpack.c.l.b16 %v658
        %v927 = vunpack.c.h.b16 %v658
        %v928 = vunpack.c.l.b16 %v659
        %v929 = vunpack.c.h.b16 %v659
        %v930 = vunpack.c.l.b16 %v660
        %v931 = vunpack.c.h.b16 %v660
        %v932 = vunpack.c.l.b16 %v661
        %v933 = vunpack.c.h.b16 %v661
        %v934 = vunpack.c.l.b16 %v662
        %v935 = vunpack.c.h.b16 %v662
        %v936 = vunpack.c.l.b16 %v663
        %v937 = vunpack.c.h.b16 %v663
        %v938 = vunpack.c.l.b16 %v664
        %v939 = vunpack.c.h.b16 %v664
        %v940 = vunpack.c.l.b16 %v665
        %v941 = vunpack.c.h.b16 %v665
        %v942 = vunpack.c.l.b16 %v666
        %v943 = vunpack.c.h.b16 %v666
        %v944 = vunpack.c.l.b16 %v667
        %v945 = vunpack.c.h.b16 %v667
        %v946 = vunpack.c.l.b16 %v668
        %v947 = vunpack.c.h.b16 %v668
        %v948 = vunpack.c.l.b16 %v669
        %v949 = vunpack.c.h.b16 %v669
        %v950 = vunpack.c.l.b16 %v670
        %v951 = vunpack.c.h.b16 %v670
        %v952 = vunpack.c.l.b16 %v671
        %v953 = vunpack.c.h.b16 %v671
        %v954 = vunpack.c.l.b16 %v672
        %v955 = vunpack.c.h.b16 %v672
        %v956 = vunpack.c.l.b16 %v673
        %v957 = vunpack.c.h.b16 %v673
        %v958 = vunpack.c.l.b16 %v674
        %v959 = vunpack.c.h.b16 %v674
        %v960 = vunpack.c.l.b16 %v675
        %v961 = vunpack.c.h.b16 %v675
        %v962 = vunpack.c.l.b16 %v676
        %v963 = vunpack.c.h.b16 %v676
        %v964 = vunpack.c.l.b16 %v677
        %v965 = vunpack.c.h.b16 %v677
        %v966 = vunpack.c.l.b16 %v678
        %v967 = vunpack.c.h.b16 %v678
        %v968 = vunpack.c.l.b16 %v679
        %v969 = vunpack.c.h.b16 %v679
        %v970 = vunpack.c.l.b16 %v680
        %v971 = vunpack.c.h.b16 %v680
        %v972 = vunpack.c.l.b16 %v681
        %v973 = vunpack.c.h.b16 %v681
        %v974 = vunpack.c.l.b16 %v682
        %v975 = vunpack.c.h.b16 %v682
        %v976 = vunpack.c.l.b16 %v683
        %v977 = vunpack.c.h.b16 %v683
        %v978 = vunpack.c.l.b16 %v684
        %v979 = vunpack.c.h.b16 %v684
        %v980 = vunpack.c.l.b16 %v685
        %v981 = vunpack.c.h.b16 %v685
        %v982 = vunpack.c.l.b16 %v686
        %v983 = vunpack.c.h.b16 %v686
        %v984 = vunpack.c.l.b16 %v687
        %v985 = vunpack.c.h.b16 %v687
        %v986 = vunpack.c.l.b16 %v688
        %v987 = vunpack.c.h.b16 %v688
        %v988 = vunpack.c.l.b16 %v689
        %v989 = vunpack.c.h.b16 %v689
        %v990 = vunpack.c.l.b16 %v690
        %v991 = vunpack.c.h.b16 %v690
        %v992 = vunpack.c.l.b16 %v691
        %v993 = vunpack.c.h.b16 %v691
        %v994 = vunpack.c.l.b16 %v692
        %v995 = vunpack.c.h.b16 %v692
        %v996 = vunpack.c.l.b16 %v693
        %v997 = vunpack.c.h.b16 %v693
        %v998 = vunpack.c.l.b16 %v694
        %v999 = vunpack.c.h.b16 %v694
        %v1000 = vunpack.c.l.b16 %v695
        %v1001 = vunpack.c.h.b16 %v695
        %v1002 = vunpack.c.l.b16 %v696
        %v1003 = vunpack.c.h.b16 %v696
        %v1004 = vunpack.c.l.b16 %v697
        %v1005 = vunpack.c.h.b16 %v697
        %v1006 = vunpack.c.l.b16 %v698
        %v1007 = vunpack.c.h.b16 %v698
        %v1008 = vunpack.c.l.b16 %v699
        %v1009 = vunpack.c.h.b16 %v699
        %v1010 = vunpack.c.l.b16 %v700
        %v1011 = vunpack.c.h.b16 %v700
        %v1012 = vunpack.c.l.b16 %v701
        %v1013 = vunpack.c.h.b16 %v701
        %v1014 = vunpack.c.l.b16 %v702
        %v1015 = vunpack.c.h.b16 %v702
        %v1016 = vunpack.c.l.b16 %v703
        %v1017 = vunpack.c.h.b16 %v703
        %v1018 = vunpack.c.l.b16 %v704
        %v1019 = vunpack.c.h.b16 %v704
        %v1020 = vunpack.c.l.b16 %v705
        %v1021 = vunpack.c.h.b16 %v705
        %v1022 = vunpack.c.l.b16 %v706
        %v1023 = vunpack.c.h.b16 %v706
        %v1024 = vunpack.c.l.b16 %v707
        %v1025 = vunpack.c.h.b16 %v707
        %v1026 = vunpack.c.l.b16 %v708
        %v1027 = vunpack.c.h.b16 %v708
        %v1028 = vunpack.c.l.b16 %v709
        %v1029 = vunpack.c.h.b16 %v709
        %v1030 = vunpack.c.l.b16 %v710
        %v1031 = vunpack.c.h.b16 %v710
        %v1032 = vunpack.c.l.b16 %v711
        %v1033 = vunpack.c.h.b16 %v711
        %v1034 = vunpack.c.l.b16 %v712
        %v1035 = vunpack.c.h.b16 %v712
        %v1036 = vunpack.c.l.b16 %v713
        %v1037 = vunpack.c.h.b16 %v713
        %v1038 = vunpack.c.l.b16 %v714
        %v1039 = vunpack.c.h.b16 %v714
        %v1040 = vunpack.c.l.b16 %v715
        %v1041 = vunpack.c.h.b16 %v715
        %v1042 = vunpack.c.l.b16 %v716
        %v1043 = vunpack.c.h.b16 %v716
        %v1044 = vunpack.c.l.b16 %v717
        %v1045 = vunpack.c.h.b16 %v717
        %v1046 = vunpack.c.l.b16 %v718
        %v1047 = vunpack.c.h.b16 %v718
        %v1048 = vunpack.c.l.b16 %v719
        %v1049 = vunpack.c.h.b16 %v719
        %v1050 = vunpack.c.l.b16 %v720
        %v1051 = vunpack.c.h.b16 %v720
        %v1052 = vunpack.c.l.b16 %v721
        %v1053 = vunpack.c.h.b16 %v721
        %v1054 = vunpack.c.l.b16 %v722
        %v1055 = vunpack.c.h.b16 %v722
        %v1056 = vunpack.c.l.b16 %v723
        %v1057 = vunpack.c.h.b16 %v723
        %v1058 = vunpack.c.l.b16 %v724
        %v1059 = vunpack.c.h.b16 %v724
        %v1060 = vunpack.c.l.b16 %v725
        %v1061 = vunpack.c.h.b16 %v725
        %v1062 = vunpack.c.l.b16 %v726
        %v1063 = vunpack.c.h.b16 %v726
        %v1064 = vunpack.c.l.b16 %v727
        %v1065 = vunpack.c.h.b16 %v727
        %v1066 = vunpack.c.l.b16 %v728
        %v1067 = vunpack.c.h.b16 %v728
        %v1068 = vunpack.c.l.b16 %v729
        %v1069 = vunpack.c.h.b16 %v729
        %v1070 = vunpack.c.l.b16 %v730
        %v1071 = vunpack.c.h.b16 %v730
        %v1072 = vunpack.c.l.b16 %v731
        %v1073 = vunpack.c.h.b16 %v731
        %v1074 = vunpack.c.l.b16 %v732
        %v1075 = vunpack.c.h.b16 %v732
        %v1076 = vunpack.c.l.b16 %v733
        %v1077 = vunpack.c.h.b16 %v733
        %v1078 = vunpack.c.l.b16 %v734
        %v1079 = vunpack.c.h.b16 %v734
        %v1080 = vunpack.c.l.b16 %v735
        %v1081 = vunpack.c.h.b16 %v735
        %v1082 = vunpack.c.l.b16 %v736
        %v1083 = vunpack.c.h.b16 %v736
        %v1084 = vunpack.c.l.b16 %v737
        %v1085 = vunpack.c.h.b16 %v737
        %v1086 = vunpack.c.l.b16 %v738
        %v1087 = vunpack.c.h.b16 %v738
        %v1088 = vunpack.c.l.b16 %v739
        %v1089 = vunpack.c.h.b16 %v739
        %v1090 = vunpack.c.l.b16 %v740
        %v1091 = vunpack.c.h.b16 %v740
        %v1092 = vunpack.c.l.b16 %v741
        %v1093 = vunpack.c.h.b16 %v741
        %v1094 = vunpack.c.l.b16 %v742
        %v1095 = vunpack.c.h.b16 %v742
        %v1096 = vunpack.c.l.b16 %v743
        %v1097 = vunpack.c.h.b16 %v743
        %v1098 = vunpack.c.l.b16 %v744
        %v1099 = vunpack.c.h.b16 %v744
        %v1100 = vunpack.c.l.b16 %v745
        %v1101 = vunpack.c.h.b16 %v745
        %v1102 = vunpack.c.l.b16 %v746
        %v1103 = vunpack.c.h.b16 %v746
        %v1104 = vunpack.c.l.b16 %v747
        %v1105 = vunpack.c.h.b16 %v747
        %v1106 = vunpack.c.l.b16 %v748
        %v1107 = vunpack.c.h.b16 %v748
        %v1108 = vunpack.c.l.b16 %v749
        %v1109 = vunpack.c.h.b16 %v749
        %v1110 = vunpack.c.l.b16 %v750
        %v1111 = vunpack.c.h.b16 %v750
        %v1112 = vunpack.c.l.b16 %v751
        %v1113 = vunpack.c.h.b16 %v751
        %v1114 = vunpack.c.l.b16 %v752
        %v1115 = vunpack.c.h.b16 %v752
        %v1116 = vunpack.c.l.b16 %v753
        %v1117 = vunpack.c.h.b16 %v753
        %v1118 = vunpack.c.l.b16 %v754
        %v1119 = vunpack.c.h.b16 %v754
        %v1120 = vunpack.c.l.b16 %v755
        %v1121 = vunpack.c.h.b16 %v755
        %v1122 = vunpack.c.l.b16 %v756
        %v1123 = vunpack.c.h.b16 %v756
        %v1124 = vunpack.c.l.b16 %v757
        %v1125 = vunpack.c.h.b16 %v757
        %v1126 = vunpack.c.l.b16 %v758
        %v1127 = vunpack.c.h.b16 %v758
        %v1128 = vunpack.c.l.b16 %v759
        %v1129 = vunpack.c.h.b16 %v759
        %v1130 = vunpack.c.l.b16 %v760
        %v1131 = vunpack.c.h.b16 %v760
        %v1132 = vunpack.c.l.b16 %v761
        %v1133 = vunpack.c.h.b16 %v761
        %v1134 = vunpack.c.l.b16 %v762
        %v1135 = vunpack.c.h.b16 %v762
        %v1136 = vunpack.c.l.b16 %v763
        %v1137 = vunpack.c.h.b16 %v763
        %v1138 = vunpack.c.l.b16 %v764
        %v1139 = vunpack.c.h.b16 %v764
        %v1140 = vunpack.c.l.b16 %v765
        %v1141 = vunpack.c.h.b16 %v765
        %v1142 = vunpack.c.l.b16 %v766
        %v1143 = vunpack.c.h.b16 %v766
        %v1144 = vunpack.c.l.b16 %v767
        %v1145 = vunpack.c.h.b16 %v767
        %v1146 = vunpack.c.l.b16 %v768
        %v1147 = vunpack.c.h.b16 %v768
        %v1148 = vunpack.c.l.b16 %v769
        %v1149 = vunpack.c.h.b16 %v769
        %v1150 = vunpack.c.l.b16 %v770
        %v1151 = vunpack.c.h.b16 %v770
        %v1152 = vunpack.c.l.b16 %v771
        %v1153 = vunpack.c.h.b16 %v771
        %v1154 = vunpack.c.l.b16 %v772
        %v1155 = vunpack.c.h.b16 %v772
        %v1156 = vunpack.c.l.b16 %v773
        %v1157 = vunpack.c.h.b16 %v773
        %v1158 = vpack.c.b16 %v910, %v902
        %v1159 = vpack.c.b16 %v911, %v903
        %v1160 = vpack.c.b16 %v912, %v904
        %v1161 = vpack.c.b16 %v913, %v905
        %v1162 = vpack.c.b16 %v914, %v906
        %v1163 = vpack.c.b16 %v915, %v907
        %v1164 = vpack.c.b16 %v916, %v908
        %v1165 = vpack.c.b16 %v917, %v909
        %v1166 = vpack.c.b16 %v926, %v918
        %v1167 = vpack.c.b16 %v927, %v919
        %v1168 = vpack.c.b16 %v928, %v920
        %v1169 = vpack.c.b16 %v929, %v921
        %v1170 = vpack.c.b16 %v930, %v922
        %v1171 = vpack.c.b16 %v931, %v923
        %v1172 = vpack.c.b16 %v932, %v924
        %v1173 = vpack.c.b16 %v933, %v925
        %v1174 = vpack.c.b16 %v942, %v934
        %v1175 = vpack.c.b16 %v943, %v935
        %v1176 = vpack.c.b16 %v944, %v936
        %v1177 = vpack.c.b16 %v945, %v937
        %v1178 = vpack.c.b16 %v946, %v938
        %v1179 = vpack.c.b16 %v947, %v939
        %v1180 = vpack.c.b16 %v948, %v940
        %v1181 = vpack.c.b16 %v949, %v941
        %v1182 = vpack.c.b16 %v958, %v950
        %v1183 = vpack.c.b16 %v959, %v951
        %v1184 = vpack.c.b16 %v960, %v952
        %v1185 = vpack.c.b16 %v961, %v953
        %v1186 = vpack.c.b16 %v962, %v954
        %v1187 = vpack.c.b16 %v963, %v955
        %v1188 = vpack.c.b16 %v964, %v956
        %v1189 = vpack.c.b16 %v965, %v957
        %v1190 = vpack.c.b16 %v974, %v966
        %v1191 = vpack.c.b16 %v975, %v967
        %v1192 = vpack.c.b16 %v976, %v968
        %v1193 = vpack.c.b16 %v977, %v969
        %v1194 = vpack.c.b16 %v978, %v970
        %v1195 = vpack.c.b16 %v979, %v971
        %v1196 = vpack.c.b16 %v980, %v972
        %v1197 = vpack.c.b16 %v981, %v973
        %v1198 = vpack.c.b16 %v990, %v982
        %v1199 = vpack.c.b16 %v991, %v983
        %v1200 = vpack.c.b16 %v992, %v984
        %v1201 = vpack.c.b16 %v993, %v985
        %v1202 = vpack.c.b16 %v994, %v986
        %v1203 = vpack.c.b16 %v995, %v987
        %v1204 = vpack.c.b16 %v996, %v988
        %v1205 = vpack.c.b16 %v997, %v989
        %v1206 = vpack.c.b16 %v1006, %v998
        %v1207 = vpack.c.b16 %v1007, %v999
        %v1208 = vpack.c.b16 %v1008, %v1000
        %v1209 = vpack.c.b16 %v1009, %v1001
        %v1210 = vpack.c.b16 %v1010, %v1002
        %v1211 = vpack.c.b16 %v1011, %v1003
        %v1212 = vpack.c.b16 %v1012, %v1004
        %v1213 = vpack.c.b16 %v1013, %v1005
        %v1214 = vpack.c.b16 %v1022, %v1014
        %v1215 = vpack.c.b16 %v1023, %v1015
        %v1216 = vpack.c.b16 %v1024, %v1016
        %v1217 = vpack.c.b16 %v1025, %v1017
        %v1218 = vpack.c.b16 %v1026, %v1018
        %v1219 = vpack.c.b16 %v1027, %v1019
        %v1220 = vpack.c.b16 %v1028, %v1020
        %v1221 = vpack.c.b16 %v1029, %v1021
        %v1222 = vpack.c.b16 %v1038, %v1030
        %v1223 = vpack.c.b16 %v1039, %v1031
        %v1224 = vpack.c.b16 %v1040, %v1032
        %v1225 = vpack.c.b16 %v1041, %v1033
        %v1226 = vpack.c.b16 %v1042, %v1034
        %v1227 = vpack.c.b16 %v1043, %v1035
        %v1228 = vpack.c.b16 %v1044, %v1036
        %v1229 = vpack.c.b16 %v1045, %v1037
        %v1230 = vpack.c.b16 %v1054, %v1046
        %v1231 = vpack.c.b16 %v1055, %v1047
        %v1232 = vpack.c.b16 %v1056, %v1048
        %v1233 = vpack.c.b16 %v1057, %v1049
        %v1234 = vpack.c.b16 %v1058, %v1050
        %v1235 = vpack.c.b16 %v1059, %v1051
        %v1236 = vpack.c.b16 %v1060, %v1052
        %v1237 = vpack.c.b16 %v1061, %v1053
        %v1238 = vpack.c.b16 %v1070, %v1062
        %v1239 = vpack.c.b16 %v1071, %v1063
        %v1240 = vpack.c.b16 %v1072, %v1064
        %v1241 = vpack.c.b16 %v1073, %v1065
        %v1242 = vpack.c.b16 %v1074, %v1066
        %v1243 = vpack.c.b16 %v1075, %v1067
        %v1244 = vpack.c.b16 %v1076, %v1068
        %v1245 = vpack.c.b16 %v1077, %v1069
        %v1246 = vpack.c.b16 %v1086, %v1078
        %v1247 = vpack.c.b16 %v1087, %v1079
        %v1248 = vpack.c.b16 %v1088, %v1080
        %v1249 = vpack.c.b16 %v1089, %v1081
        %v1250 = vpack.c.b16 %v1090, %v1082
        %v1251 = vpack.c.b16 %v1091, %v1083
        %v1252 = vpack.c.b16 %v1092, %v1084
        %v1253 = vpack.c.b16 %v1093, %v1085
        %v1254 = vpack.c.b16 %v1102, %v1094
        %v1255 = vpack.c.b16 %v1103, %v1095
        %v1256 = vpack.c.b16 %v1104, %v1096
        %v1257 = vpack.c.b16 %v1105, %v1097
        %v1258 = vpack.c.b16 %v1106, %v1098
        %v1259 = vpack.c.b16 %v1107, %v1099
        %v1260 = vpack.c.b16 %v1108, %v1100
        %v1261 = vpack.c.b16 %v1109, %v1101
        %v1262 = vpack.c.b16 %v1118, %v1110
        %v1263 = vpack.c.b16 %v1119, %v1111
        %v1264 = vpack.c.b16 %v1120, %v1112
        %v1265 = vpack.c.b16 %v1121, %v1113
        %v1266 = vpack.c.b16 %v1122, %v1114
        %v1267 = vpack.c.b16 %v1123, %v1115
        %v1268 = vpack.c.b16 %v1124, %v1116
        %v1269 = vpack.c.b16 %v1125, %v1117
        %v1270 = vpack.c.b16 %v1134, %v1126
        %v1271 = vpack.c.b16 %v1135, %v1127
        %v1272 = vpack.c.b16 %v1136, %v1128
        %v1273 = vpack.c.b16 %v1137, %v1129
        %v1274 = vpack.c.b16 %v1138, %v1130
        %v1275 = vpack.c.b16 %v1139, %v1131
        %v1276 = vpack.c.b16 %v1140, %v1132
        %v1277 = vpack.c.b16 %v1141, %v1133
        %v1278 = vpack.c.b16 %v1150, %v1142
        %v1279 = vpack.c.b16 %v1151, %v1143
        %v1280 = vpack.c.b16 %v1152, %v1144
        %v1281 = vpack.c.b16 %v1153, %v1145
        %v1282 = vpack.c.b16 %v1154, %v1146
        %v1283 = vpack.c.b16 %v1155, %v1147
        %v1284 = vpack.c.b16 %v1156, %v1148
        %v1285 = vpack.c.b16 %v1157, %v1149
        %1414 = vmatpush.bf16.msra.mxu0 %v1214
        %1415 = vmatpush.bf16.msra.mxu0 %v1206
        %1416 = vmatpush.bf16.msra.mxu0 %v1198
        %1417 = vmatpush.bf16.msra.mxu0 %v1190
        %1418 = vmatpush.bf16.msra.mxu0 %v1182
        %1419 = vmatpush.bf16.msra.mxu0 %v1174
        %1420 = vmatpush.bf16.msra.mxu0 %v1166
        %1421 = vmatpush.bf16.msra.mxu0 %v1158
        %1422 = vmatmul.bf16.gmra.mxu0 %v644
        %v1423 = vpop.f32.mrf.mxu0
        %v1424 = vadd.f32 0.0, %v1423
        %v1425 = vpop.f32.mrf.mxu0
        %v1426 = vadd.f32 0.0, %v1425
        %1427 = vdwg.mxu0
        %1428 = vmatpush.bf16.msra.mxu0 %v1278
        %1429 = vmatpush.bf16.msra.mxu0 %v1270
        %1430 = vmatpush.bf16.msra.mxu0 %v1262
        %1431 = vmatpush.bf16.msra.mxu0 %v1254
        %1432 = vmatpush.bf16.msra.mxu0 %v1246
        %1433 = vmatpush.bf16.msra.mxu0 %v1238
        %1434 = vmatpush.bf16.msra.mxu0 %v1230
        %1435 = vmatpush.bf16.msra.mxu0 %v1222
        %1436 = vmatmul.bf16.gmra.mxu0 %v645
        %v1437 = vpop.f32.mrf.mxu0
        %v1438 = vadd.f32 %v1424, %v1437
        %v1439 = vpop.f32.mrf.mxu0
        %v1440 = vadd.f32 %v1426, %v1439
        %1441 = vdwg.mxu0
        %1442 = vmatpush.bf16.msra.mxu0 %v1215
        %1443 = vmatpush.bf16.msra.mxu0 %v1207
        %1444 = vmatpush.bf16.msra.mxu0 %v1199
        %1445 = vmatpush.bf16.msra.mxu0 %v1191
        %1446 = vmatpush.bf16.msra.mxu0 %v1183
        %1447 = vmatpush.bf16.msra.mxu0 %v1175
        %1448 = vmatpush.bf16.msra.mxu0 %v1167
        %1449 = vmatpush.bf16.msra.mxu0 %v1159
        %1450 = vmatmul.bf16.gmra.mxu0 %v644
        %v1451 = vpop.f32.mrf.mxu0
        %v1452 = vadd.f32 0.0, %v1451
        %v1453 = vpop.f32.mrf.mxu0
        %v1454 = vadd.f32 0.0, %v1453
        %1455 = vdwg.mxu0
        %1456 = vmatpush.bf16.msra.mxu0 %v1279
        %1457 = vmatpush.bf16.msra.mxu0 %v1271
        %1458 = vmatpush.bf16.msra.mxu0 %v1263
        %1459 = vmatpush.bf16.msra.mxu0 %v1255
        %1460 = vmatpush.bf16.msra.mxu0 %v1247
        %1461 = vmatpush.bf16.msra.mxu0 %v1239
        %1462 = vmatpush.bf16.msra.mxu0 %v1231
        %1463 = vmatpush.bf16.msra.mxu0 %v1223
        %1464 = vmatmul.bf16.gmra.mxu0 %v645
        %v1465 = vpop.f32.mrf.mxu0
        %v1466 = vadd.f32 %v1452, %v1465
        %v1467 = vpop.f32.mrf.mxu0
        %v1468 = vadd.f32 %v1454, %v1467
        %1469 = vdwg.mxu0
        %1470 = vmatpush.bf16.msra.mxu0 %v1216
        %1471 = vmatpush.bf16.msra.mxu0 %v1208
        %1472 = vmatpush.bf16.msra.mxu0 %v1200
        %1473 = vmatpush.bf16.msra.mxu0 %v1192
        %1474 = vmatpush.bf16.msra.mxu0 %v1184
        %1475 = vmatpush.bf16.msra.mxu0 %v1176
        %1476 = vmatpush.bf16.msra.mxu0 %v1168
        %1477 = vmatpush.bf16.msra.mxu0 %v1160
        %1478 = vmatmul.bf16.gmra.mxu0 %v644
        %v1479 = vpop.f32.mrf.mxu0
        %v1480 = vadd.f32 0.0, %v1479
        %v1481 = vpop.f32.mrf.mxu0
        %v1482 = vadd.f32 0.0, %v1481
        %1483 = vdwg.mxu0
        %1484 = vmatpush.bf16.msra.mxu0 %v1280
        %1485 = vmatpush.bf16.msra.mxu0 %v1272
        %1486 = vmatpush.bf16.msra.mxu0 %v1264
        %1487 = vmatpush.bf16.msra.mxu0 %v1256
        %1488 = vmatpush.bf16.msra.mxu0 %v1248
        %1489 = vmatpush.bf16.msra.mxu0 %v1240
        %1490 = vmatpush.bf16.msra.mxu0 %v1232
        %1491 = vmatpush.bf16.msra.mxu0 %v1224
        %1492 = vmatmul.bf16.gmra.mxu0 %v645
        %v1493 = vpop.f32.mrf.mxu0
        %v1494 = vadd.f32 %v1480, %v1493
        %v1495 = vpop.f32.mrf.mxu0
        %v1496 = vadd.f32 %v1482, %v1495
        %1497 = vdwg.mxu0
        %1498 = vmatpush.bf16.msra.mxu0 %v1217
        %1499 = vmatpush.bf16.msra.mxu0 %v1209
        %1500 = vmatpush.bf16.msra.mxu0 %v1201
        %1501 = vmatpush.bf16.msra.mxu0 %v1193
        %1502 = vmatpush.bf16.msra.mxu0 %v1185
        %1503 = vmatpush.bf16.msra.mxu0 %v1177
        %1504 = vmatpush.bf16.msra.mxu0 %v1169
        %1505 = vmatpush.bf16.msra.mxu0 %v1161
        %1506 = vmatmul.bf16.gmra.mxu0 %v644
        %v1507 = vpop.f32.mrf.mxu0
        %v1508 = vadd.f32 0.0, %v1507
        %v1509 = vpop.f32.mrf.mxu0
        %v1510 = vadd.f32 0.0, %v1509
        %1511 = vdwg.mxu0
        %1512 = vmatpush.bf16.msra.mxu0 %v1281
        %1513 = vmatpush.bf16.msra.mxu0 %v1273
        %1514 = vmatpush.bf16.msra.mxu0 %v1265
        %1515 = vmatpush.bf16.msra.mxu0 %v1257
        %1516 = vmatpush.bf16.msra.mxu0 %v1249
        %1517 = vmatpush.bf16.msra.mxu0 %v1241
        %1518 = vmatpush.bf16.msra.mxu0 %v1233
        %1519 = vmatpush.bf16.msra.mxu0 %v1225
        %1520 = vmatmul.bf16.gmra.mxu0 %v645
        %v1521 = vpop.f32.mrf.mxu0
        %v1522 = vadd.f32 %v1508, %v1521
        %v1523 = vpop.f32.mrf.mxu0
        %v1524 = vadd.f32 %v1510, %v1523
        %1525 = vdwg.mxu0
        %1526 = vmatpush.bf16.msra.mxu0 %v1218
        %1527 = vmatpush.bf16.msra.mxu0 %v1210
        %1528 = vmatpush.bf16.msra.mxu0 %v1202
        %1529 = vmatpush.bf16.msra.mxu0 %v1194
        %1530 = vmatpush.bf16.msra.mxu0 %v1186
        %1531 = vmatpush.bf16.msra.mxu0 %v1178
        %1532 = vmatpush.bf16.msra.mxu0 %v1170
        %1533 = vmatpush.bf16.msra.mxu0 %v1162
        %1534 = vmatmul.bf16.gmra.mxu0 %v644
        %v1535 = vpop.f32.mrf.mxu0
        %v1536 = vadd.f32 0.0, %v1535
        %v1537 = vpop.f32.mrf.mxu0
        %v1538 = vadd.f32 0.0, %v1537
        %1539 = vdwg.mxu0
        %1540 = vmatpush.bf16.msra.mxu0 %v1282
        %1541 = vmatpush.bf16.msra.mxu0 %v1274
        %1542 = vmatpush.bf16.msra.mxu0 %v1266
        %1543 = vmatpush.bf16.msra.mxu0 %v1258
        %1544 = vmatpush.bf16.msra.mxu0 %v1250
        %1545 = vmatpush.bf16.msra.mxu0 %v1242
        %1546 = vmatpush.bf16.msra.mxu0 %v1234
        %1547 = vmatpush.bf16.msra.mxu0 %v1226
        %1548 = vmatmul.bf16.gmra.mxu0 %v645
        %v1549 = vpop.f32.mrf.mxu0
        %v1550 = vadd.f32 %v1536, %v1549
        %v1551 = vpop.f32.mrf.mxu0
        %v1552 = vadd.f32 %v1538, %v1551
        %1553 = vdwg.mxu0
        %1554 = vmatpush.bf16.msra.mxu0 %v1219
        %1555 = vmatpush.bf16.msra.mxu0 %v1211
        %1556 = vmatpush.bf16.msra.mxu0 %v1203
        %1557 = vmatpush.bf16.msra.mxu0 %v1195
        %1558 = vmatpush.bf16.msra.mxu0 %v1187
        %1559 = vmatpush.bf16.msra.mxu0 %v1179
        %1560 = vmatpush.bf16.msra.mxu0 %v1171
        %1561 = vmatpush.bf16.msra.mxu0 %v1163
        %1562 = vmatmul.bf16.gmra.mxu0 %v644
        %v1563 = vpop.f32.mrf.mxu0
        %v1564 = vadd.f32 0.0, %v1563
        %v1565 = vpop.f32.mrf.mxu0
        %v1566 = vadd.f32 0.0, %v1565
        %1567 = vdwg.mxu0
        %1568 = vmatpush.bf16.msra.mxu0 %v1283
        %1569 = vmatpush.bf16.msra.mxu0 %v1275
        %1570 = vmatpush.bf16.msra.mxu0 %v1267
        %1571 = vmatpush.bf16.msra.mxu0 %v1259
        %1572 = vmatpush.bf16.msra.mxu0 %v1251
        %1573 = vmatpush.bf16.msra.mxu0 %v1243
        %1574 = vmatpush.bf16.msra.mxu0 %v1235
        %1575 = vmatpush.bf16.msra.mxu0 %v1227
        %1576 = vmatmul.bf16.gmra.mxu0 %v645
        %v1577 = vpop.f32.mrf.mxu0
        %v1578 = vadd.f32 %v1564, %v1577
        %v1579 = vpop.f32.mrf.mxu0
        %v1580 = vadd.f32 %v1566, %v1579
        %1581 = vdwg.mxu0
        %1582 = vmatpush.bf16.msra.mxu0 %v1220
        %1583 = vmatpush.bf16.msra.mxu0 %v1212
        %1584 = vmatpush.bf16.msra.mxu0 %v1204
        %1585 = vmatpush.bf16.msra.mxu0 %v1196
        %1586 = vmatpush.bf16.msra.mxu0 %v1188
        %1587 = vmatpush.bf16.msra.mxu0 %v1180
        %1588 = vmatpush.bf16.msra.mxu0 %v1172
        %1589 = vmatpush.bf16.msra.mxu0 %v1164
        %1590 = vmatmul.bf16.gmra.mxu0 %v644
        %v1591 = vpop.f32.mrf.mxu0
        %v1592 = vadd.f32 0.0, %v1591
        %v1593 = vpop.f32.mrf.mxu0
        %v1594 = vadd.f32 0.0, %v1593
        %1595 = vdwg.mxu0
        %1596 = vmatpush.bf16.msra.mxu0 %v1284
        %1597 = vmatpush.bf16.msra.mxu0 %v1276
        %1598 = vmatpush.bf16.msra.mxu0 %v1268
        %1599 = vmatpush.bf16.msra.mxu0 %v1260
        %1600 = vmatpush.bf16.msra.mxu0 %v1252
        %1601 = vmatpush.bf16.msra.mxu0 %v1244
        %1602 = vmatpush.bf16.msra.mxu0 %v1236
        %1603 = vmatpush.bf16.msra.mxu0 %v1228
        %1604 = vmatmul.bf16.gmra.mxu0 %v645
        %v1605 = vpop.f32.mrf.mxu0
        %v1606 = vadd.f32 %v1592, %v1605
        %v1607 = vpop.f32.mrf.mxu0
        %v1608 = vadd.f32 %v1594, %v1607
        %1609 = vdwg.mxu0
        %1610 = vmatpush.bf16.msra.mxu0 %v1221
        %1611 = vmatpush.bf16.msra.mxu0 %v1213
        %1612 = vmatpush.bf16.msra.mxu0 %v1205
        %1613 = vmatpush.bf16.msra.mxu0 %v1197
        %1614 = vmatpush.bf16.msra.mxu0 %v1189
        %1615 = vmatpush.bf16.msra.mxu0 %v1181
        %1616 = vmatpush.bf16.msra.mxu0 %v1173
        %1617 = vmatpush.bf16.msra.mxu0 %v1165
        %1618 = vmatmul.bf16.gmra.mxu0 %v644
        %v1619 = vpop.f32.mrf.mxu0
        %v1620 = vadd.f32 0.0, %v1619
        %v1621 = vpop.f32.mrf.mxu0
        %v1622 = vadd.f32 0.0, %v1621
        %1623 = vdwg.mxu0
        %1624 = vmatpush.bf16.msra.mxu0 %v1285
        %1625 = vmatpush.bf16.msra.mxu0 %v1277
        %1626 = vmatpush.bf16.msra.mxu0 %v1269
        %1627 = vmatpush.bf16.msra.mxu0 %v1261
        %1628 = vmatpush.bf16.msra.mxu0 %v1253
        %1629 = vmatpush.bf16.msra.mxu0 %v1245
        %1630 = vmatpush.bf16.msra.mxu0 %v1237
        %1631 = vmatpush.bf16.msra.mxu0 %v1229
        %1632 = vmatmul.bf16.gmra.mxu0 %v645
        %v1633 = vpop.f32.mrf.mxu0
        %v1634 = vadd.f32 %v1620, %v1633
        %v1635 = vpop.f32.mrf.mxu0
        %v1636 = vadd.f32 %v1622, %v1635
        %1637 = vdwg.mxu0
        %v1638 = vadd.f32 %v628, %v1438
        %v1639 = vadd.f32 %v629, %v1466
        %v1640 = vadd.f32 %v630, %v1494
        %v1641 = vadd.f32 %v631, %v1522
        %v1642 = vadd.f32 %v632, %v1550
        %v1643 = vadd.f32 %v633, %v1578
        %v1644 = vadd.f32 %v634, %v1606
        %v1645 = vadd.f32 %v635, %v1634
        %v1646 = vadd.f32 %v636, %v1440
        %v1647 = vadd.f32 %v637, %v1468
        %v1648 = vadd.f32 %v638, %v1496
        %v1649 = vadd.f32 %v639, %v1524
        %v1650 = vadd.f32 %v640, %v1552
        %v1651 = vadd.f32 %v641, %v1580
        %v1652 = vadd.f32 %v642, %v1608
        %v1653 = vadd.f32 %v643, %v1636
        %1654 = vst [vmem:[#allocation2] sm:$0xff] %v1638
        %1655 = vst [vmem:[#allocation2 + $0x8] sm:$0xff] %v1639
        %1656 = vst [vmem:[#allocation2 + $0x10] sm:$0xff] %v1640
        %1657 = vst [vmem:[#allocation2 + $0x18] sm:$0xff] %v1641
        %1658 = vst [vmem:[#allocation2 + $0x20] sm:$0xff] %v1642
        %1659 = vst [vmem:[#allocation2 + $0x28] sm:$0xff] %v1643
        %1660 = vst [vmem:[#allocation2 + $0x30] sm:$0xff] %v1644
        %1661 = vst [vmem:[#allocation2 + $0x38] sm:$0xff] %v1645
        %1662 = vst [vmem:[#allocation2 + $0x40] sm:$0xff] %v1646
        %1663 = vst [vmem:[#allocation2 + $0x48] sm:$0xff] %v1647
        %1664 = vst [vmem:[#allocation2 + $0x50] sm:$0xff] %v1648
        %1665 = vst [vmem:[#allocation2 + $0x58] sm:$0xff] %v1649
        %1666 = vst [vmem:[#allocation2 + $0x60] sm:$0xff] %v1650
        %1667 = vst [vmem:[#allocation2 + $0x68] sm:$0xff] %v1651
        %1668 = vst [vmem:[#allocation2 + $0x70] sm:$0xff] %v1652
        %1669 = vst [vmem:[#allocation2 + $0x78] sm:$0xff] %v1653
        %p1670 = scmp.eq.s32.totalorder %s26, 1
        // Predicated region
        $region53: #{siamese_forward.2} parent=35 // pred_check
          %p1671 = pneg %p1670
        $region54: #{siamese_forward.2} parent=35 // pred_check_branch
          %1673 = sbr.rel (%p1671) target = $region56
        $region55: #{siamese_forward.2} parent=35 // pred_region
          %v1674 = vld [vmem:[#allocation2] sm:$0xff]
          %v1675 = vld [vmem:[#allocation2 + $0x8] sm:$0xff]
          %v1676 = vld [vmem:[#allocation2 + $0x10] sm:$0xff]
          %v1677 = vld [vmem:[#allocation2 + $0x18] sm:$0xff]
          %v1678 = vld [vmem:[#allocation2 + $0x20] sm:$0xff]
          %v1679 = vld [vmem:[#allocation2 + $0x28] sm:$0xff]
          %v1680 = vld [vmem:[#allocation2 + $0x30] sm:$0xff]
          %v1681 = vld [vmem:[#allocation2 + $0x38] sm:$0xff]
          %v1682 = vld [vmem:[#allocation2 + $0x40] sm:$0xff]
          %v1683 = vld [vmem:[#allocation2 + $0x48] sm:$0xff]
          %v1684 = vld [vmem:[#allocation2 + $0x50] sm:$0xff]
          %v1685 = vld [vmem:[#allocation2 + $0x58] sm:$0xff]
          %v1686 = vld [vmem:[#allocation2 + $0x60] sm:$0xff]
          %v1687 = vld [vmem:[#allocation2 + $0x68] sm:$0xff]
          %v1688 = vld [vmem:[#allocation2 + $0x70] sm:$0xff]
          %v1689 = vld [vmem:[#allocation2 + $0x78] sm:$0xff]
          %1690 = vst [vmem:[%s337] sm:$0xff] %v1674
          %1691 = vst [vmem:[%s337 + $0x8] sm:$0xff] %v1675
          %1692 = vst [vmem:[%s337 + $0x10] sm:$0xff] %v1676
          %1693 = vst [vmem:[%s337 + $0x18] sm:$0xff] %v1677
          %1694 = vst [vmem:[%s337 + $0x20] sm:$0xff] %v1678
          %1695 = vst [vmem:[%s337 + $0x28] sm:$0xff] %v1679
          %1696 = vst [vmem:[%s337 + $0x30] sm:$0xff] %v1680
          %1697 = vst [vmem:[%s337 + $0x38] sm:$0xff] %v1681
          %1698 = vst [vmem:[%s337 + $0x40] sm:$0xff] %v1682
          %1699 = vst [vmem:[%s337 + $0x48] sm:$0xff] %v1683
          %1700 = vst [vmem:[%s337 + $0x50] sm:$0xff] %v1684
          %1701 = vst [vmem:[%s337 + $0x58] sm:$0xff] %v1685
          %1702 = vst [vmem:[%s337 + $0x60] sm:$0xff] %v1686
          %1703 = vst [vmem:[%s337 + $0x68] sm:$0xff] %v1687
          %1704 = vst [vmem:[%s337 + $0x70] sm:$0xff] %v1688
          %1705 = vst [vmem:[%s337 + $0x78] sm:$0xff] %v1689
        $region56: #{siamese_forward.2} parent=35 // pred_fallthru
          _
        %p1706 = scmp.lt.s32.totalorder %s25, 1
        %s1707 = scalar_select %p1706, %s25, 1
        %s1708 = smul.addr %s1707, 16
        %s1709 = smul.addr %s1708, 8
        %s1710 = scalar_lea.vmem %s4, %s1709
        // Predicated region
        $region57: #{siamese_forward.2} parent=35 // pred_check
          %p1711 = pneg %p162
        $region58: #{siamese_forward.2} parent=35 // pred_check_branch
          %1713 = sbr.rel (%p1711) target = $region60
        $region59: #{siamese_forward.2} parent=35 // pred_region
          _
        $region60: #{siamese_forward.2} parent=35 // pred_fallthru
          _
      $region36: #{siamese_forward.2} parent=5 // pred_fallthru
        _
      %p1714 = scmp.le.s32.totalorder 2, %s16
      // Predicated region
      $region61: #{siamese_forward.2} parent=5 // pred_check
        %p1715 = pneg %p1714
      $region62: #{siamese_forward.2} parent=5 // pred_check_branch
        %1717 = sbr.rel (%p1715) target = $region64
      $region63: #{siamese_forward.2} parent=5 // pred_region
        %s1718 = ssub.s32 %s16, 2
        // Predicated region
        $region65: #{siamese_forward.2} parent=63 // pred_check
          %p1719 = pneg %p168
        $region66: #{siamese_forward.2} parent=63 // pred_check_branch
          %1721 = sbr.rel (%p1719) target = $region68
        $region67: #{siamese_forward.2} parent=63 // pred_region
          %p1722 = scmp.lt.s32.totalorder %s27, 1
          %s1723 = scalar_select %p1722, %s27, 1
          %s1724 = smul.addr %s1723, 16
          %s1725 = smul.addr %s1724, 8
          %s1726 = scalar_lea.vmem %s4, %s1725
        $region68: #{siamese_forward.2} parent=63 // pred_fallthru
          _
      $region64: #{siamese_forward.2} parent=5 // pred_fallthru
        _
    $region6: #{siamese_forward.2} parent=1 // loop_footer
      %s20 = sadd.s32 1, %s16
    $region7: #{siamese_forward.2} parent=1 // loop_footer_branch
      %15 = sbr.rel target = $region3
    $region8: #{siamese_forward.2} parent=1 // loop_exit
      _
    %1727 = vsyncpa [#allocation4], 1
    %s1728 = scalar_lea.sflag [#allocation4], 1
    %1729 = vsyncpa %s1728, 1
    %1730 = vsyncpa [#allocation6], 1
    %s1731 = scalar_lea.sflag [#allocation6], 1
    %1732 = vsyncpa %s1731, 1

</llo_original>
